<compile_context>
chip_gen: v6e
topology: v6e:2x2x1
jax: 0.10.0
libtpu: 0.0.40
codegen_flags: <defaults>
</compile_context>

<pallas_src>
import jax
import jax.numpy as jnp
from jax.experimental import pallas as pl
from jax.experimental.pallas import tpu as pltpu


def _round_up(x, m):
    return -(-x // m) * m


# ---------------------------------------------------------------------------
# Pallas kernel: regular VALID KHxKW conv on a channel-major, padded, flattened
# input, computed as one MXU matmul over an in-VMEM im2col patch matrix.
# ---------------------------------------------------------------------------
def _make_conv_kernel(offsets, cin_p, m, has_residual):
    """offsets: flattened lane offset of each kernel tap, cin_p: padded Cin,
    m: number of output lanes (N * Hp * Wp)."""

    def _build_patches(x_ref, p_ref):
        # fused ReLU: relu(pad(x)) == pad(relu(x)) because the padding is zeros.
        x = jnp.maximum(x_ref[...], 0.0)
        for t, d in enumerate(offsets):
            # static, sublane-aligned store (cin_p is a multiple of 8)
            p_ref[t * cin_p:(t + 1) * cin_p, :] = x[:, d:d + m]

    def kernel(x_ref, w_ref, o_ref, p_ref):
        _build_patches(x_ref, p_ref)
        acc = jnp.dot(w_ref[...], p_ref[...], preferred_element_type=jnp.float32)
        o_ref[...] = acc.astype(o_ref.dtype)

    def kernel_res(x_ref, w_ref, r_ref, o_ref, p_ref):
        _build_patches(x_ref, p_ref)
        acc = jnp.dot(w_ref[...], p_ref[...], preferred_element_type=jnp.float32)
        acc = acc + r_ref[...].astype(jnp.float32)   # fused X_h2h + X_l2h
        o_ref[...] = acc.astype(o_ref.dtype)

    return kernel_res if has_residual else kernel


def _conv_flat(xf, wflat, plane, ksize, residual=None):
    """out[co, p] = sum_{tap, ci} wflat[co, tap*Cin_p+ci] * relu(xf)[ci, p + off(tap)]
    (+ residual).  The output stays in the padded N*Hp*Wp lane layout; the caller
    slices out the valid Hout x Wout region."""
    n, hp, wp, m = plane
    kh, kw = ksize
    cin_p, mext = xf.shape
    cout, k = wflat.shape
    assert k == kh * kw * cin_p
    offsets = [a * wp + b for a in range(kh) for b in range(kw)]

    kernel = _make_conv_kernel(offsets, cin_p, m, residual is not None)

    in_specs = [pl.BlockSpec((cin_p, mext), lambda i: (0, 0)),
                pl.BlockSpec((cout, k), lambda i: (0, 0))]
    args = [xf, wflat]
    bytes_accessed = 4 * (cin_p * mext + cout * k + cout * m)
    if residual is not None:
        in_specs.append(pl.BlockSpec((cout, m), lambda i: (0, 0)))
        args.append(residual)
        bytes_accessed += 4 * cout * m

    return pl.pallas_call(
        kernel,
        out_shape=jax.ShapeDtypeStruct((cout, m), xf.dtype),
        grid=(1,),
        in_specs=in_specs,
        out_specs=pl.BlockSpec((cout, m), lambda i: (0, 0)),
        scratch_shapes=[pltpu.VMEM((k, m), xf.dtype)],
        compiler_params=pltpu.CompilerParams(dimension_semantics=("arbitrary",)),
        cost_estimate=pl.CostEstimate(flops=2 * cout * k * m, transcendentals=0,
                                      bytes_accessed=bytes_accessed),
    )(*args)


# ---------------------------------------------------------------------------
# Glue (plain JAX): layout prep only — no im2col blowup, no extra conv math.
# ---------------------------------------------------------------------------
def _prep_input(x_cm, pads, interior, ksize):
    """x_cm: (C, N, H, W) channel-major.  Zero-pad (and zero-dilate by `interior`)
    the spatial dims, flatten to (Cin_padded, N*Hp*Wp + tail) so every conv tap is a
    static lane shift.  Returns (xflat, (N, Hp, Wp, M))."""
    kh, kw = ksize
    ph, pw = pads
    zero = jnp.zeros((), x_cm.dtype)
    xp = jax.lax.pad(x_cm, zero,
                     ((0, 0, 0), (0, 0, 0), (ph, ph, interior), (pw, pw, interior)))
    c, n, hp, wp = xp.shape
    m = n * hp * wp
    tail = (kh - 1) * wp + (kw - 1)   # max tap offset -> no OOB lane slices in-kernel
    cin_p = _round_up(c, 8)           # sublane-aligned channel count
    xf = jnp.pad(xp.reshape(c, m), ((0, cin_p - c), (0, tail)))
    return xf, (n, hp, wp, m)


def _flatten_transpose_weight(w_t, ksize):
    """PyTorch conv_transpose2d weight (Cin, Cout, KH, KW) -> equivalent regular-conv
    weight flattened to (Cout, KH*KW*Cin_padded), tap-major then channel (matching
    the in-kernel patch layout)."""
    kh, kw = ksize
    cin, cout = w_t.shape[0], w_t.shape[1]
    cin_p = _round_up(cin, 8)
    w_eq = jnp.transpose(jnp.flip(w_t, axis=(2, 3)), (1, 0, 2, 3))   # (Cout, Cin, KH, KW)
    w_eq = jnp.pad(w_eq, ((0, 0), (0, cin_p - cin), (0, 0), (0, 0)))
    w_eq = jnp.transpose(w_eq, (0, 2, 3, 1))                         # (Cout, KH, KW, Cin_p)
    return w_eq.reshape(cout, kh * kw * cin_p)


# ---------------------------------------------------------------------------
# Module
# ---------------------------------------------------------------------------
class TLastGoctaveConvPallas:
    """JAX/Pallas port of TLastGoctaveConv (stride=1, dilation=1, groups=1, bias=False)."""

    def __init__(self, in_channels, out_channels, kernel_size, alpha_in=0.5,
                 alpha_out=0, stride=1, padding=1, dilation=1, groups=1,
                 bias=False, *, key):
        assert stride == 1 and dilation == 1 and groups == 1 and not bias
        kh, kw = kernel_size
        assert 0 <= padding <= kh - 1 and padding <= kw - 1
        c_hh_in = int(in_channels * (1 - alpha_in))
        c_hh_out = int(out_channels * (1 - alpha_out))
        c_ll_in = int(in_channels * alpha_in)
        c_lh_in = int(out_channels)
        c_lh_out = int(out_channels * (1 - alpha_out))

        k1, k2, k3 = jax.random.split(key, 3)
        # torch.FloatTensor(...) is uninitialized memory; use small deterministic normals.
        self.weights_hh = 0.1 * jax.random.normal(k1, (c_hh_in, c_hh_out, kh, kw), jnp.float32)
        self.weights_ll = 0.1 * jax.random.normal(k2, (c_ll_in, int(out_channels), kh, kw), jnp.float32)
        self.weights_lh = 0.1 * jax.random.normal(k3, (c_lh_in, c_lh_out, kh, kw), jnp.float32)

        self.ksize = (kh, kw)
        self.stride = stride
        self.padding = padding
        # bias=False -> zero bias in the reference -> no-op, omitted from kernels.

        # Pre-flattened equivalent regular-conv weights (done once, stays resident).
        self.wflat_hh = _flatten_transpose_weight(self.weights_hh, self.ksize)
        self.wflat_ll = _flatten_transpose_weight(self.weights_ll, self.ksize)
        self.wflat_lh = _flatten_transpose_weight(self.weights_lh, self.ksize)

    def __call__(self, x):
        X_h, X_l = x
        n, ch, hh, wh = X_h.shape
        _, cl, hl, wl = X_l.shape
        assert ch == self.weights_hh.shape[0] and cl == self.weights_ll.shape[0]
        kh, kw = self.ksize
        p = self.padding
        pe = (kh - 1 - p, kw - 1 - p)     # equivalent regular-conv padding

        # --- X_h2h = conv_transpose(relu(X_h), W_hh, stride=1) (padded lane layout) ---
        xf_h, plane_h = _prep_input(jnp.transpose(X_h, (1, 0, 2, 3)), pe, 0, self.ksize)
        h2h = _conv_flat(xf_h, self.wflat_hh, plane_h, self.ksize)

        # --- X_l2l = conv_transpose(relu(X_l), W_ll, stride=1) ---
        xf_l, plane_l = _prep_input(jnp.transpose(X_l, (1, 0, 2, 3)), pe, 0, self.ksize)
        l2l = _conv_flat(xf_l, self.wflat_ll, plane_l, self.ksize)

        # valid region of X_l2l, kept channel-major (no extra HBM transpose)
        _, hpl, wpl, _ = plane_l
        hol, wol = hpl - (kh - 1), wpl - (kw - 1)
        l2l_cm = l2l.reshape(-1, n, hpl, wpl)[:, :, :hol, :wol]

        # --- X_l2h = conv_transpose(relu(X_l2l), W_lh, stride=2), fused + X_h2h ---
        # stride-2 transpose conv == zero-dilate input (interior=1) + regular conv.
        xf_lh, plane_lh = _prep_input(l2l_cm, pe, 1, self.ksize)
        assert plane_lh == plane_h, "requires H_h == 2*H_l - 1 (as the PyTorch forward does)"
        out = _conv_flat(xf_lh, self.wflat_lh, plane_lh, self.ksize, residual=h2h)

        # extract valid region, back to NCHW
        _, hp, wp, _ = plane_lh
        ho, wo = hp - (kh - 1), wp - (kw - 1)
        out = out.reshape(-1, n, hp, wp)[:, :, :ho, :wo]
        return jnp.transpose(out, (1, 0, 2, 3))


# ---------------------------------------------------------------------------
# Pure-JAX reference (PyTorch conv_transpose2d semantics) for correctness check
# ---------------------------------------------------------------------------
def _conv_transpose_ref(x, w_t, stride, padding):
    kh, kw = w_t.shape[2], w_t.shape[3]
    w_eq = jnp.transpose(jnp.flip(w_t, axis=(2, 3)), (1, 0, 2, 3))   # (Cout, Cin, KH, KW)
    return jax.lax.conv_general_dilated(
        x, w_eq, window_strides=(1, 1),
        padding=[(kh - 1 - padding, kh - 1 - padding),
                 (kw - 1 - padding, kw - 1 - padding)],
        lhs_dilation=(stride, stride),
        dimension_numbers=("NCHW", "OIHW", "NCHW"))


def _reference_forward(X_h, X_l, w_hh, w_ll, w_lh, padding):
    h2h = _conv_transpose_ref(jax.nn.relu(X_h), w_hh, 1, padding)
    l2l = _conv_transpose_ref(jax.nn.relu(X_l), w_ll, 1, padding)
    l2h = _conv_transpose_ref(jax.nn.relu(l2l), w_lh, 2, padding)
    return h2h + l2h


if __name__ == "__main__":
    key = jax.random.PRNGKey(0)
    k_w, k_h, k_l = jax.random.split(key, 3)

    batch = 2
    in_channels, out_channels = 8, 8
    alpha_in, alpha_out = 0.5, 0.0
    Hl = Wl = 8
    Hh = Wh = 2 * Hl - 1    # the forward only adds up if H_h == 2*H_l - 1 (stride-2 convT)

    c_h = int(in_channels * (1 - alpha_in))   # 4
    c_l = int(in_channels * alpha_in)         # 4
    X_h = jax.random.normal(k_h, (batch, c_h, Hh, Wh), dtype=jnp.float32)
    X_l = jax.random.normal(k_l, (batch, c_l, Hl, Wl), dtype=jnp.float32)

    mod = TLastGoctaveConvPallas(in_channels, out_channels, (3, 3),
                                 alpha_in=alpha_in, alpha_out=alpha_out,
                                 stride=1, padding=1, key=k_w)

    fwd = jax.jit(lambda xh, xl: mod((xh, xl)))
    out = jax.block_until_ready(fwd(X_h, X_l))

    ref = _reference_forward(X_h, X_l, mod.weights_hh, mod.weights_ll,
                             mod.weights_lh, mod.padding)
    assert out.shape == (batch, int(out_channels * (1 - alpha_out)), Hh, Wh)
    assert jnp.allclose(out, ref, atol=1e-3, rtol=1e-3)

    print("KERNEL_OK")
</pallas_src>

<mosaic_0001>
module attributes {stable_mosaic.version = 11 : i64} {
  func.func @kernel(%arg0: i32, %arg1: memref<8x222xf32, #tpu.memory_space<vmem>>, %arg2: memref<8x72xf32, #tpu.memory_space<vmem>>, %arg3: memref<8x200xf32, #tpu.memory_space<vmem>>, %arg4: memref<72x200xf32, #tpu.memory_space<vmem>>) attributes {dimension_semantics = [#tpu.dimension_semantics<arbitrary>], iteration_bounds = array<i64: 1>, scalar_prefetch = 0 : i64, scratch_operands = 1 : i64, tpu.core_type = #tpu.core_type<tc>, window_params = [{pipeline_mode = #tpu.pipeline_mode<synchronous>, transform_indices = @transform_0, window_bounds = array<i64: 8, 222>}, {pipeline_mode = #tpu.pipeline_mode<synchronous>, transform_indices = @transform_1, window_bounds = array<i64: 8, 72>}, {pipeline_mode = #tpu.pipeline_mode<synchronous>, transform_indices = @transform_2, window_bounds = array<i64: 8, 200>}]} {
    %c0 = arith.constant 0 : index
    %c0_0 = arith.constant 0 : index
    %0 = vector.load %arg1[%c0, %c0_0] : memref<8x222xf32, #tpu.memory_space<vmem>>, vector<8x222xf32>
    %cst = arith.constant 0.000000e+00 : f32
    %1 = vector.broadcast %cst : f32 to vector<8x222xf32>
    %2 = arith.maximumf %0, %1 : vector<8x222xf32>
    %3 = vector.extract_strided_slice %2 {offsets = [0, 0], sizes = [8, 200], strides = [1, 1]} : vector<8x222xf32> to vector<8x200xf32>
    %c0_1 = arith.constant 0 : index
    %c0_2 = arith.constant 0 : index
    %4 = vector.load %arg4[%c0_1, %c0_2] : memref<72x200xf32, #tpu.memory_space<vmem>>, vector<8x200xf32>
    tpu.vector_store %arg4[%c0_1, %c0_2], %3 {strides = array<i32>} : memref<72x200xf32, #tpu.memory_space<vmem>>, vector<8x200xf32>,
    %5 = vector.extract_strided_slice %2 {offsets = [0, 1], sizes = [8, 200], strides = [1, 1]} : vector<8x222xf32> to vector<8x200xf32>
    %c8 = arith.constant 8 : index
    %c0_3 = arith.constant 0 : index
    %6 = vector.load %arg4[%c8, %c0_3] : memref<72x200xf32, #tpu.memory_space<vmem>>, vector<8x200xf32>
    tpu.vector_store %arg4[%c8, %c0_3], %5 {strides = array<i32>} : memref<72x200xf32, #tpu.memory_space<vmem>>, vector<8x200xf32>,
    %7 = vector.extract_strided_slice %2 {offsets = [0, 2], sizes = [8, 200], strides = [1, 1]} : vector<8x222xf32> to vector<8x200xf32>
    %c16 = arith.constant 16 : index
    %c0_4 = arith.constant 0 : index
    %8 = vector.load %arg4[%c16, %c0_4] : memref<72x200xf32, #tpu.memory_space<vmem>>, vector<8x200xf32>
    tpu.vector_store %arg4[%c16, %c0_4], %7 {strides = array<i32>} : memref<72x200xf32, #tpu.memory_space<vmem>>, vector<8x200xf32>,
    %9 = vector.extract_strided_slice %2 {offsets = [0, 10], sizes = [8, 200], strides = [1, 1]} : vector<8x222xf32> to vector<8x200xf32>
    %c24 = arith.constant 24 : index
    %c0_5 = arith.constant 0 : index
    %10 = vector.load %arg4[%c24, %c0_5] : memref<72x200xf32, #tpu.memory_space<vmem>>, vector<8x200xf32>
    tpu.vector_store %arg4[%c24, %c0_5], %9 {strides = array<i32>} : memref<72x200xf32, #tpu.memory_space<vmem>>, vector<8x200xf32>,
    %11 = vector.extract_strided_slice %2 {offsets = [0, 11], sizes = [8, 200], strides = [1, 1]} : vector<8x222xf32> to vector<8x200xf32>
    %c32 = arith.constant 32 : index
    %c0_6 = arith.constant 0 : index
    %12 = vector.load %arg4[%c32, %c0_6] : memref<72x200xf32, #tpu.memory_space<vmem>>, vector<8x200xf32>
    tpu.vector_store %arg4[%c32, %c0_6], %11 {strides = array<i32>} : memref<72x200xf32, #tpu.memory_space<vmem>>, vector<8x200xf32>,
    %13 = vector.extract_strided_slice %2 {offsets = [0, 12], sizes = [8, 200], strides = [1, 1]} : vector<8x222xf32> to vector<8x200xf32>
    %c40 = arith.constant 40 : index
    %c0_7 = arith.constant 0 : index
    %14 = vector.load %arg4[%c40, %c0_7] : memref<72x200xf32, #tpu.memory_space<vmem>>, vector<8x200xf32>
    tpu.vector_store %arg4[%c40, %c0_7], %13 {strides = array<i32>} : memref<72x200xf32, #tpu.memory_space<vmem>>, vector<8x200xf32>,
    %15 = vector.extract_strided_slice %2 {offsets = [0, 20], sizes = [8, 200], strides = [1, 1]} : vector<8x222xf32> to vector<8x200xf32>
    %c48 = arith.constant 48 : index
    %c0_8 = arith.constant 0 : index
    %16 = vector.load %arg4[%c48, %c0_8] : memref<72x200xf32, #tpu.memory_space<vmem>>, vector<8x200xf32>
    tpu.vector_store %arg4[%c48, %c0_8], %15 {strides = array<i32>} : memref<72x200xf32, #tpu.memory_space<vmem>>, vector<8x200xf32>,
    %17 = vector.extract_strided_slice %2 {offsets = [0, 21], sizes = [8, 200], strides = [1, 1]} : vector<8x222xf32> to vector<8x200xf32>
    %c56 = arith.constant 56 : index
    %c0_9 = arith.constant 0 : index
    %18 = vector.load %arg4[%c56, %c0_9] : memref<72x200xf32, #tpu.memory_space<vmem>>, vector<8x200xf32>
    tpu.vector_store %arg4[%c56, %c0_9], %17 {strides = array<i32>} : memref<72x200xf32, #tpu.memory_space<vmem>>, vector<8x200xf32>,
    %19 = vector.extract_strided_slice %2 {offsets = [0, 22], sizes = [8, 200], strides = [1, 1]} : vector<8x222xf32> to vector<8x200xf32>
    %c64 = arith.constant 64 : index
    %c0_10 = arith.constant 0 : index
    %20 = vector.load %arg4[%c64, %c0_10] : memref<72x200xf32, #tpu.memory_space<vmem>>, vector<8x200xf32>
    tpu.vector_store %arg4[%c64, %c0_10], %19 {strides = array<i32>} : memref<72x200xf32, #tpu.memory_space<vmem>>, vector<8x200xf32>,
    %c0_11 = arith.constant 0 : index
    %c0_12 = arith.constant 0 : index
    %21 = vector.load %arg2[%c0_11, %c0_12] : memref<8x72xf32, #tpu.memory_space<vmem>>, vector<8x72xf32>
    %c0_13 = arith.constant 0 : index
    %c0_14 = arith.constant 0 : index
    %22 = vector.load %arg4[%c0_13, %c0_14] : memref<72x200xf32, #tpu.memory_space<vmem>>, vector<72x200xf32>
    %cst_15 = arith.constant dense<0.000000e+00> : vector<8x200xf32>
    %23 = tpu.matmul %21, %22, %cst_15 {dimension_numbers = #tpu.dot_dimension_numbers<[1], [0], [0], [1], [0, 0, 1, 1], [], []>} : vector<8x72xf32>, vector<72x200xf32>, vector<8x200xf32> -> vector<8x200xf32>
    %c0_16 = arith.constant 0 : index
    %c0_17 = arith.constant 0 : index
    %24 = vector.load %arg3[%c0_16, %c0_17] : memref<8x200xf32, #tpu.memory_space<vmem>>, vector<8x200xf32>
    tpu.vector_store %arg3[%c0_16, %c0_17], %23 {strides = array<i32>} : memref<8x200xf32, #tpu.memory_space<vmem>>, vector<8x200xf32>,
    return
  }
  func.func @transform_0(%arg0: i32) -> (i32, i32) {
    %c0_i32 = arith.constant 0 : i32
    %c0_i32_0 = arith.constant 0 : i32
    %c0_i32_1 = arith.constant 0 : i32
    return %c0_i32, %c0_i32_0 : i32, i32
  }
  func.func @transform_1(%arg0: i32) -> (i32, i32) {
    %c0_i32 = arith.constant 0 : i32
    %c0_i32_0 = arith.constant 0 : i32
    %c0_i32_1 = arith.constant 0 : i32
    return %c0_i32, %c0_i32_0 : i32, i32
  }
  func.func @transform_2(%arg0: i32) -> (i32, i32) {
    %c0_i32 = arith.constant 0 : i32
    %c0_i32_0 = arith.constant 0 : i32
    %c0_i32_1 = arith.constant 0 : i32
    return %c0_i32, %c0_i32_0 : i32, i32
  }
}

module attributes {stable_mosaic.version = 11 : i64} {
  func.func @kernel(%arg0: i32, %arg1: memref<8x614xf32, #tpu.memory_space<vmem>>, %arg2: memref<8x72xf32, #tpu.memory_space<vmem>>, %arg3: memref<8x578xf32, #tpu.memory_space<vmem>>, %arg4: memref<72x578xf32, #tpu.memory_space<vmem>>) attributes {dimension_semantics = [#tpu.dimension_semantics<arbitrary>], iteration_bounds = array<i64: 1>, scalar_prefetch = 0 : i64, scratch_operands = 1 : i64, tpu.core_type = #tpu.core_type<tc>, window_params = [{pipeline_mode = #tpu.pipeline_mode<synchronous>, transform_indices = @transform_0, window_bounds = array<i64: 8, 614>}, {pipeline_mode = #tpu.pipeline_mode<synchronous>, transform_indices = @transform_1, window_bounds = array<i64: 8, 72>}, {pipeline_mode = #tpu.pipeline_mode<synchronous>, transform_indices = @transform_2, window_bounds = array<i64: 8, 578>}]} {
    %c0 = arith.constant 0 : index
    %c0_0 = arith.constant 0 : index
    %0 = vector.load %arg1[%c0, %c0_0] : memref<8x614xf32, #tpu.memory_space<vmem>>, vector<8x614xf32>
    %cst = arith.constant 0.000000e+00 : f32
    %1 = vector.broadcast %cst : f32 to vector<8x614xf32>
    %2 = arith.maximumf %0, %1 : vector<8x614xf32>
    %3 = vector.extract_strided_slice %2 {offsets = [0, 0], sizes = [8, 578], strides = [1, 1]} : vector<8x614xf32> to vector<8x578xf32>
    %c0_1 = arith.constant 0 : index
    %c0_2 = arith.constant 0 : index
    %4 = vector.load %arg4[%c0_1, %c0_2] : memref<72x578xf32, #tpu.memory_space<vmem>>, vector<8x578xf32>
    tpu.vector_store %arg4[%c0_1, %c0_2], %3 {strides = array<i32>} : memref<72x578xf32, #tpu.memory_space<vmem>>, vector<8x578xf32>,
    %5 = vector.extract_strided_slice %2 {offsets = [0, 1], sizes = [8, 578], strides = [1, 1]} : vector<8x614xf32> to vector<8x578xf32>
    %c8 = arith.constant 8 : index
    %c0_3 = arith.constant 0 : index
    %6 = vector.load %arg4[%c8, %c0_3] : memref<72x578xf32, #tpu.memory_space<vmem>>, vector<8x578xf32>
    tpu.vector_store %arg4[%c8, %c0_3], %5 {strides = array<i32>} : memref<72x578xf32, #tpu.memory_space<vmem>>, vector<8x578xf32>,
    %7 = vector.extract_strided_slice %2 {offsets = [0, 2], sizes = [8, 578], strides = [1, 1]} : vector<8x614xf32> to vector<8x578xf32>
    %c16 = arith.constant 16 : index
    %c0_4 = arith.constant 0 : index
    %8 = vector.load %arg4[%c16, %c0_4] : memref<72x578xf32, #tpu.memory_space<vmem>>, vector<8x578xf32>
    tpu.vector_store %arg4[%c16, %c0_4], %7 {strides = array<i32>} : memref<72x578xf32, #tpu.memory_space<vmem>>, vector<8x578xf32>,
    %9 = vector.extract_strided_slice %2 {offsets = [0, 17], sizes = [8, 578], strides = [1, 1]} : vector<8x614xf32> to vector<8x578xf32>
    %c24 = arith.constant 24 : index
    %c0_5 = arith.constant 0 : index
    %10 = vector.load %arg4[%c24, %c0_5] : memref<72x578xf32, #tpu.memory_space<vmem>>, vector<8x578xf32>
    tpu.vector_store %arg4[%c24, %c0_5], %9 {strides = array<i32>} : memref<72x578xf32, #tpu.memory_space<vmem>>, vector<8x578xf32>,
    %11 = vector.extract_strided_slice %2 {offsets = [0, 18], sizes = [8, 578], strides = [1, 1]} : vector<8x614xf32> to vector<8x578xf32>
    %c32 = arith.constant 32 : index
    %c0_6 = arith.constant 0 : index
    %12 = vector.load %arg4[%c32, %c0_6] : memref<72x578xf32, #tpu.memory_space<vmem>>, vector<8x578xf32>
    tpu.vector_store %arg4[%c32, %c0_6], %11 {strides = array<i32>} : memref<72x578xf32, #tpu.memory_space<vmem>>, vector<8x578xf32>,
    %13 = vector.extract_strided_slice %2 {offsets = [0, 19], sizes = [8, 578], strides = [1, 1]} : vector<8x614xf32> to vector<8x578xf32>
    %c40 = arith.constant 40 : index
    %c0_7 = arith.constant 0 : index
    %14 = vector.load %arg4[%c40, %c0_7] : memref<72x578xf32, #tpu.memory_space<vmem>>, vector<8x578xf32>
    tpu.vector_store %arg4[%c40, %c0_7], %13 {strides = array<i32>} : memref<72x578xf32, #tpu.memory_space<vmem>>, vector<8x578xf32>,
    %15 = vector.extract_strided_slice %2 {offsets = [0, 34], sizes = [8, 578], strides = [1, 1]} : vector<8x614xf32> to vector<8x578xf32>
    %c48 = arith.constant 48 : index
    %c0_8 = arith.constant 0 : index
    %16 = vector.load %arg4[%c48, %c0_8] : memref<72x578xf32, #tpu.memory_space<vmem>>, vector<8x578xf32>
    tpu.vector_store %arg4[%c48, %c0_8], %15 {strides = array<i32>} : memref<72x578xf32, #tpu.memory_space<vmem>>, vector<8x578xf32>,
    %17 = vector.extract_strided_slice %2 {offsets = [0, 35], sizes = [8, 578], strides = [1, 1]} : vector<8x614xf32> to vector<8x578xf32>
    %c56 = arith.constant 56 : index
    %c0_9 = arith.constant 0 : index
    %18 = vector.load %arg4[%c56, %c0_9] : memref<72x578xf32, #tpu.memory_space<vmem>>, vector<8x578xf32>
    tpu.vector_store %arg4[%c56, %c0_9], %17 {strides = array<i32>} : memref<72x578xf32, #tpu.memory_space<vmem>>, vector<8x578xf32>,
    %19 = vector.extract_strided_slice %2 {offsets = [0, 36], sizes = [8, 578], strides = [1, 1]} : vector<8x614xf32> to vector<8x578xf32>
    %c64 = arith.constant 64 : index
    %c0_10 = arith.constant 0 : index
    %20 = vector.load %arg4[%c64, %c0_10] : memref<72x578xf32, #tpu.memory_space<vmem>>, vector<8x578xf32>
    tpu.vector_store %arg4[%c64, %c0_10], %19 {strides = array<i32>} : memref<72x578xf32, #tpu.memory_space<vmem>>, vector<8x578xf32>,
    %c0_11 = arith.constant 0 : index
    %c0_12 = arith.constant 0 : index
    %21 = vector.load %arg2[%c0_11, %c0_12] : memref<8x72xf32, #tpu.memory_space<vmem>>, vector<8x72xf32>
    %c0_13 = arith.constant 0 : index
    %c0_14 = arith.constant 0 : index
    %22 = vector.load %arg4[%c0_13, %c0_14] : memref<72x578xf32, #tpu.memory_space<vmem>>, vector<72x578xf32>
    %cst_15 = arith.constant dense<0.000000e+00> : vector<8x578xf32>
    %23 = tpu.matmul %21, %22, %cst_15 {dimension_numbers = #tpu.dot_dimension_numbers<[1], [0], [0], [1], [0, 0, 1, 1], [], []>} : vector<8x72xf32>, vector<72x578xf32>, vector<8x578xf32> -> vector<8x578xf32>
    %c0_16 = arith.constant 0 : index
    %c0_17 = arith.constant 0 : index
    %24 = vector.load %arg3[%c0_16, %c0_17] : memref<8x578xf32, #tpu.memory_space<vmem>>, vector<8x578xf32>
    tpu.vector_store %arg3[%c0_16, %c0_17], %23 {strides = array<i32>} : memref<8x578xf32, #tpu.memory_space<vmem>>, vector<8x578xf32>,
    return
  }
  func.func @transform_0(%arg0: i32) -> (i32, i32) {
    %c0_i32 = arith.constant 0 : i32
    %c0_i32_0 = arith.constant 0 : i32
    %c0_i32_1 = arith.constant 0 : i32
    return %c0_i32, %c0_i32_0 : i32, i32
  }
  func.func @transform_1(%arg0: i32) -> (i32, i32) {
    %c0_i32 = arith.constant 0 : i32
    %c0_i32_0 = arith.constant 0 : i32
    %c0_i32_1 = arith.constant 0 : i32
    return %c0_i32, %c0_i32_0 : i32, i32
  }
  func.func @transform_2(%arg0: i32) -> (i32, i32) {
    %c0_i32 = arith.constant 0 : i32
    %c0_i32_0 = arith.constant 0 : i32
    %c0_i32_1 = arith.constant 0 : i32
    return %c0_i32, %c0_i32_0 : i32, i32
  }
}

module attributes {stable_mosaic.version = 11 : i64} {
  func.func @kernel_res(%arg0: i32, %arg1: memref<8x614xf32, #tpu.memory_space<vmem>>, %arg2: memref<8x72xf32, #tpu.memory_space<vmem>>, %arg3: memref<8x578xf32, #tpu.memory_space<vmem>>, %arg4: memref<8x578xf32, #tpu.memory_space<vmem>>, %arg5: memref<72x578xf32, #tpu.memory_space<vmem>>) attributes {dimension_semantics = [#tpu.dimension_semantics<arbitrary>], iteration_bounds = array<i64: 1>, scalar_prefetch = 0 : i64, scratch_operands = 1 : i64, tpu.core_type = #tpu.core_type<tc>, window_params = [{pipeline_mode = #tpu.pipeline_mode<synchronous>, transform_indices = @transform_0, window_bounds = array<i64: 8, 614>}, {pipeline_mode = #tpu.pipeline_mode<synchronous>, transform_indices = @transform_1, window_bounds = array<i64: 8, 72>}, {pipeline_mode = #tpu.pipeline_mode<synchronous>, transform_indices = @transform_2, window_bounds = array<i64: 8, 578>}, {pipeline_mode = #tpu.pipeline_mode<synchronous>, transform_indices = @transform_3, window_bounds = array<i64: 8, 578>}]} {
    %c0 = arith.constant 0 : index
    %c0_0 = arith.constant 0 : index
    %0 = vector.load %arg1[%c0, %c0_0] : memref<8x614xf32, #tpu.memory_space<vmem>>, vector<8x614xf32>
    %cst = arith.constant 0.000000e+00 : f32
    %1 = vector.broadcast %cst : f32 to vector<8x614xf32>
    %2 = arith.maximumf %0, %1 : vector<8x614xf32>
    %3 = vector.extract_strided_slice %2 {offsets = [0, 0], sizes = [8, 578], strides = [1, 1]} : vector<8x614xf32> to vector<8x578xf32>
    %c0_1 = arith.constant 0 : index
    %c0_2 = arith.constant 0 : index
    %4 = vector.load %arg5[%c0_1, %c0_2] : memref<72x578xf32, #tpu.memory_space<vmem>>, vector<8x578xf32>
    tpu.vector_store %arg5[%c0_1, %c0_2], %3 {strides = array<i32>} : memref<72x578xf32, #tpu.memory_space<vmem>>, vector<8x578xf32>,
    %5 = vector.extract_strided_slice %2 {offsets = [0, 1], sizes = [8, 578], strides = [1, 1]} : vector<8x614xf32> to vector<8x578xf32>
    %c8 = arith.constant 8 : index
    %c0_3 = arith.constant 0 : index
    %6 = vector.load %arg5[%c8, %c0_3] : memref<72x578xf32, #tpu.memory_space<vmem>>, vector<8x578xf32>
    tpu.vector_store %arg5[%c8, %c0_3], %5 {strides = array<i32>} : memref<72x578xf32, #tpu.memory_space<vmem>>, vector<8x578xf32>,
    %7 = vector.extract_strided_slice %2 {offsets = [0, 2], sizes = [8, 578], strides = [1, 1]} : vector<8x614xf32> to vector<8x578xf32>
    %c16 = arith.constant 16 : index
    %c0_4 = arith.constant 0 : index
    %8 = vector.load %arg5[%c16, %c0_4] : memref<72x578xf32, #tpu.memory_space<vmem>>, vector<8x578xf32>
    tpu.vector_store %arg5[%c16, %c0_4], %7 {strides = array<i32>} : memref<72x578xf32, #tpu.memory_space<vmem>>, vector<8x578xf32>,
    %9 = vector.extract_strided_slice %2 {offsets = [0, 17], sizes = [8, 578], strides = [1, 1]} : vector<8x614xf32> to vector<8x578xf32>
    %c24 = arith.constant 24 : index
    %c0_5 = arith.constant 0 : index
    %10 = vector.load %arg5[%c24, %c0_5] : memref<72x578xf32, #tpu.memory_space<vmem>>, vector<8x578xf32>
    tpu.vector_store %arg5[%c24, %c0_5], %9 {strides = array<i32>} : memref<72x578xf32, #tpu.memory_space<vmem>>, vector<8x578xf32>,
    %11 = vector.extract_strided_slice %2 {offsets = [0, 18], sizes = [8, 578], strides = [1, 1]} : vector<8x614xf32> to vector<8x578xf32>
    %c32 = arith.constant 32 : index
    %c0_6 = arith.constant 0 : index
    %12 = vector.load %arg5[%c32, %c0_6] : memref<72x578xf32, #tpu.memory_space<vmem>>, vector<8x578xf32>
    tpu.vector_store %arg5[%c32, %c0_6], %11 {strides = array<i32>} : memref<72x578xf32, #tpu.memory_space<vmem>>, vector<8x578xf32>,
    %13 = vector.extract_strided_slice %2 {offsets = [0, 19], sizes = [8, 578], strides = [1, 1]} : vector<8x614xf32> to vector<8x578xf32>
    %c40 = arith.constant 40 : index
    %c0_7 = arith.constant 0 : index
    %14 = vector.load %arg5[%c40, %c0_7] : memref<72x578xf32, #tpu.memory_space<vmem>>, vector<8x578xf32>
    tpu.vector_store %arg5[%c40, %c0_7], %13 {strides = array<i32>} : memref<72x578xf32, #tpu.memory_space<vmem>>, vector<8x578xf32>,
    %15 = vector.extract_strided_slice %2 {offsets = [0, 34], sizes = [8, 578], strides = [1, 1]} : vector<8x614xf32> to vector<8x578xf32>
    %c48 = arith.constant 48 : index
    %c0_8 = arith.constant 0 : index
    %16 = vector.load %arg5[%c48, %c0_8] : memref<72x578xf32, #tpu.memory_space<vmem>>, vector<8x578xf32>
    tpu.vector_store %arg5[%c48, %c0_8], %15 {strides = array<i32>} : memref<72x578xf32, #tpu.memory_space<vmem>>, vector<8x578xf32>,
    %17 = vector.extract_strided_slice %2 {offsets = [0, 35], sizes = [8, 578], strides = [1, 1]} : vector<8x614xf32> to vector<8x578xf32>
    %c56 = arith.constant 56 : index
    %c0_9 = arith.constant 0 : index
    %18 = vector.load %arg5[%c56, %c0_9] : memref<72x578xf32, #tpu.memory_space<vmem>>, vector<8x578xf32>
    tpu.vector_store %arg5[%c56, %c0_9], %17 {strides = array<i32>} : memref<72x578xf32, #tpu.memory_space<vmem>>, vector<8x578xf32>,
    %19 = vector.extract_strided_slice %2 {offsets = [0, 36], sizes = [8, 578], strides = [1, 1]} : vector<8x614xf32> to vector<8x578xf32>
    %c64 = arith.constant 64 : index
    %c0_10 = arith.constant 0 : index
    %20 = vector.load %arg5[%c64, %c0_10] : memref<72x578xf32, #tpu.memory_space<vmem>>, vector<8x578xf32>
    tpu.vector_store %arg5[%c64, %c0_10], %19 {strides = array<i32>} : memref<72x578xf32, #tpu.memory_space<vmem>>, vector<8x578xf32>,
    %c0_11 = arith.constant 0 : index
    %c0_12 = arith.constant 0 : index
    %21 = vector.load %arg2[%c0_11, %c0_12] : memref<8x72xf32, #tpu.memory_space<vmem>>, vector<8x72xf32>
    %c0_13 = arith.constant 0 : index
    %c0_14 = arith.constant 0 : index
    %22 = vector.load %arg5[%c0_13, %c0_14] : memref<72x578xf32, #tpu.memory_space<vmem>>, vector<72x578xf32>
    %cst_15 = arith.constant dense<0.000000e+00> : vector<8x578xf32>
    %23 = tpu.matmul %21, %22, %cst_15 {dimension_numbers = #tpu.dot_dimension_numbers<[1], [0], [0], [1], [0, 0, 1, 1], [], []>} : vector<8x72xf32>, vector<72x578xf32>, vector<8x578xf32> -> vector<8x578xf32>
    %c0_16 = arith.constant 0 : index
    %c0_17 = arith.constant 0 : index
    %24 = vector.load %arg3[%c0_16, %c0_17] : memref<8x578xf32, #tpu.memory_space<vmem>>, vector<8x578xf32>
    %25 = arith.addf %23, %24 : vector<8x578xf32>
    %c0_18 = arith.constant 0 : index
    %c0_19 = arith.constant 0 : index
    %26 = vector.load %arg4[%c0_18, %c0_19] : memref<8x578xf32, #tpu.memory_space<vmem>>, vector<8x578xf32>
    tpu.vector_store %arg4[%c0_18, %c0_19], %25 {strides = array<i32>} : memref<8x578xf32, #tpu.memory_space<vmem>>, vector<8x578xf32>,
    return
  }
  func.func @transform_0(%arg0: i32) -> (i32, i32) {
    %c0_i32 = arith.constant 0 : i32
    %c0_i32_0 = arith.constant 0 : i32
    %c0_i32_1 = arith.constant 0 : i32
    return %c0_i32, %c0_i32_0 : i32, i32
  }
  func.func @transform_1(%arg0: i32) -> (i32, i32) {
    %c0_i32 = arith.constant 0 : i32
    %c0_i32_0 = arith.constant 0 : i32
    %c0_i32_1 = arith.constant 0 : i32
    return %c0_i32, %c0_i32_0 : i32, i32
  }
  func.func @transform_2(%arg0: i32) -> (i32, i32) {
    %c0_i32 = arith.constant 0 : i32
    %c0_i32_0 = arith.constant 0 : i32
    %c0_i32_1 = arith.constant 0 : i32
    return %c0_i32, %c0_i32_0 : i32, i32
  }
  func.func @transform_3(%arg0: i32) -> (i32, i32) {
    %c0_i32 = arith.constant 0 : i32
    %c0_i32_0 = arith.constant 0 : i32
    %c0_i32_1 = arith.constant 0 : i32
    return %c0_i32, %c0_i32_0 : i32, i32
  }
}

</mosaic_0001>

<llo_original>
// kernel: _lambda_.4
$region0: #{_lambda_.4}
  #allocation0 [shape = 'u32[]', space=smem, size = 0x4, offset = 0x4, fixed_abs, tag = 'smem constant byte address 0x4 - core index']
  #allocation1 [shape = 'u32[144,128]{1,0:T(1,128)}', space=vmem, size = 0x12000, scoped, tag = 'internal scratch']
  #allocation2 [shape = 'f32[72,200]{1,0:T(8,128)}', space=vmem, size = 0x12000, scoped, tag = 'scratch operand']
  %s0 = inlined_call_operand.vmem [shape: f32[8,222], index: 0, kind: input, shape index: {}]
  %s1 = inlined_call_operand.vmem [shape: f32[8,72], index: 1, kind: input, shape index: {}]
  %s2 = inlined_call_operand.vmem [shape: f32[8,200], index: 2, kind: output, shape index: {}]
  %s3 = sld [smem:[#allocation0]]
  $region18: #{_lambda_.4} parent=0
    _
  %s5 = ssub.s32 1, %s3
  %s6 = scalar_select 0, %s5, %s3
  // Predicated region
  $region2: #{_lambda_.4} parent=0 // pred_check
    _
  $region3: #{_lambda_.4} parent=0 // pred_check_branch
    %8 = sbr.rel (0) target = $region5
  $region4: #{_lambda_.4} parent=0 // pred_region
    _
  $region5: #{_lambda_.4} parent=0 // pred_fallthru
    _
  // Predicated region
  $region6: #{_lambda_.4} parent=0 // pred_check
    _
  $region7: #{_lambda_.4} parent=0 // pred_check_branch
    %10 = sbr.rel (0) target = $region9
  $region8: #{_lambda_.4} parent=0 // pred_region
    _
  $region9: #{_lambda_.4} parent=0 // pred_fallthru
    _
  %v11 = vld [vmem:[%s0] sm:$0xff]
  %v12 = vld [vmem:[%s0 + $0x8] sm:$0xff]
  %v13 = vmax.f32 %v11, 0.0
  %v14 = vmax.f32 %v12, 0.0
  %15 = vst [vmem:[#allocation2] sm:$0xff] %v13
  %vm16 = vcmask 588800
  %17 = vst.msk [vmem:[#allocation2 + $0x8] sm:$0xff] %vm16, %v14
  %20 = vrot.lane.b32.xlu0 %v13, 127
  %v21 = vpop.permute.xlu0 %20
  %22 = vrot.lane.b32.xlu0 %v14, 127
  %v23 = vpop.permute.xlu0 %22
  %vm24 = vcmask 1039360
  %v25 = vsel %vm24, %v21, %v23
  %28 = vst [vmem:[#allocation2 + $0x10] sm:$0xff] %v25
  %29 = vst.msk [vmem:[#allocation2 + $0x18] sm:$0xff] %vm16, %v23
  %30 = vrot.lane.b32.xlu0 %v13, 126
  %v31 = vpop.permute.xlu0 %30
  %32 = vrot.lane.b32.xlu0 %v14, 126
  %v33 = vpop.permute.xlu0 %32
  %vm34 = vcmask 1031168
  %v35 = vsel %vm34, %v31, %v33
  %38 = vst [vmem:[#allocation2 + $0x20] sm:$0xff] %v35
  %39 = vst.msk [vmem:[#allocation2 + $0x28] sm:$0xff] %vm16, %v33
  %40 = vrot.lane.b32.xlu0 %v13, 118
  %v41 = vpop.permute.xlu0 %40
  %42 = vrot.lane.b32.xlu0 %v14, 118
  %v43 = vpop.permute.xlu0 %42
  %vm44 = vcmask 965632
  %v45 = vsel %vm44, %v41, %v43
  %48 = vst [vmem:[#allocation2 + $0x30] sm:$0xff] %v45
  %49 = vst.msk [vmem:[#allocation2 + $0x38] sm:$0xff] %vm16, %v43
  %50 = vrot.lane.b32.xlu0 %v13, 117
  %v51 = vpop.permute.xlu0 %50
  %52 = vrot.lane.b32.xlu0 %v14, 117
  %v53 = vpop.permute.xlu0 %52
  %vm54 = vcmask 957440
  %v55 = vsel %vm54, %v51, %v53
  %58 = vst [vmem:[#allocation2 + $0x40] sm:$0xff] %v55
  %59 = vst.msk [vmem:[#allocation2 + $0x48] sm:$0xff] %vm16, %v53
  %60 = vrot.lane.b32.xlu0 %v13, 116
  %v61 = vpop.permute.xlu0 %60
  %62 = vrot.lane.b32.xlu0 %v14, 116
  %v63 = vpop.permute.xlu0 %62
  %vm64 = vcmask 949248
  %v65 = vsel %vm64, %v61, %v63
  %68 = vst [vmem:[#allocation2 + $0x50] sm:$0xff] %v65
  %69 = vst.msk [vmem:[#allocation2 + $0x58] sm:$0xff] %vm16, %v63
  %70 = vrot.lane.b32.xlu0 %v13, 108
  %v71 = vpop.permute.xlu0 %70
  %72 = vrot.lane.b32.xlu0 %v14, 108
  %v73 = vpop.permute.xlu0 %72
  %vm74 = vcmask 883712
  %v75 = vsel %vm74, %v71, %v73
  %78 = vst [vmem:[#allocation2 + $0x60] sm:$0xff] %v75
  %79 = vst.msk [vmem:[#allocation2 + $0x68] sm:$0xff] %vm16, %v73
  %80 = vrot.lane.b32.xlu0 %v13, 107
  %v81 = vpop.permute.xlu0 %80
  %82 = vrot.lane.b32.xlu0 %v14, 107
  %v83 = vpop.permute.xlu0 %82
  %vm84 = vcmask 875520
  %v85 = vsel %vm84, %v81, %v83
  %88 = vst [vmem:[#allocation2 + $0x70] sm:$0xff] %v85
  %89 = vst.msk [vmem:[#allocation2 + $0x78] sm:$0xff] %vm16, %v83
  %90 = vrot.lane.b32.xlu0 %v13, 106
  %v91 = vpop.permute.xlu0 %90
  %92 = vrot.lane.b32.xlu0 %v14, 106
  %v93 = vpop.permute.xlu0 %92
  %vm94 = vcmask 867328
  %v95 = vsel %vm94, %v91, %v93
  %98 = vst [vmem:[#allocation2 + $0x80] sm:$0xff] %v95
  %99 = vst.msk [vmem:[#allocation2 + $0x88] sm:$0xff] %vm16, %v93
  %v100 = vld [vmem:[%s1] sm:$0xff]
  %v101 = vld [vmem:[#allocation2] sm:$0xff]
  %v102 = vld [vmem:[#allocation2 + $0x8] sm:$0xff]
  %v103 = vld [vmem:[#allocation2 + $0x10] sm:$0xff]
  %v104 = vld [vmem:[#allocation2 + $0x18] sm:$0xff]
  %v105 = vld [vmem:[#allocation2 + $0x20] sm:$0xff]
  %v106 = vld [vmem:[#allocation2 + $0x28] sm:$0xff]
  %v107 = vld [vmem:[#allocation2 + $0x30] sm:$0xff]
  %v108 = vld [vmem:[#allocation2 + $0x38] sm:$0xff]
  %v109 = vld [vmem:[#allocation2 + $0x40] sm:$0xff]
  %v110 = vld [vmem:[#allocation2 + $0x48] sm:$0xff]
  %v111 = vld [vmem:[#allocation2 + $0x50] sm:$0xff]
  %v112 = vld [vmem:[#allocation2 + $0x58] sm:$0xff]
  %v113 = vld [vmem:[#allocation2 + $0x60] sm:$0xff]
  %v114 = vld [vmem:[#allocation2 + $0x68] sm:$0xff]
  %v115 = vld [vmem:[#allocation2 + $0x70] sm:$0xff]
  %v116 = vld [vmem:[#allocation2 + $0x78] sm:$0xff]
  %v117 = vld [vmem:[#allocation2 + $0x80] sm:$0xff]
  %v118 = vld [vmem:[#allocation2 + $0x88] sm:$0xff]
  %v120 = vsel %vm16, %v100, 0
  %122 = vmatprep.subr.mxu0 0.0
  %123 = vmatpush1.msra.mxu0 0.0
  %124 = vmatprep.subr.mxu0 0.0
  %125 = vmatpush1.msra.mxu0 0.0
  %126 = vmatprep.subr.mxu0 0.0
  %127 = vmatpush1.msra.mxu0 0.0
  %128 = vmatprep.subr.mxu0 0.0
  %129 = vmatpush1.msra.mxu0 0.0
  %130 = vmatprep.subr.mxu0 0.0
  %131 = vmatpush1.msra.mxu0 0.0
  %132 = vmatprep.subr.mxu0 0.0
  %133 = vmatpush1.msra.mxu0 0.0
  %134 = vmatprep.subr.mxu0 0.0
  %135 = vmatpush1.msra.mxu0 0.0
  %136 = vmatprep.subr.mxu0 %v118
  %137 = vmatpush1.msra.mxu0 %v117
  %138 = vmatprep.subr.mxu0 %v116
  %139 = vmatpush1.msra.mxu0 %v115
  %140 = vmatprep.subr.mxu0 %v114
  %141 = vmatpush1.msra.mxu0 %v113
  %142 = vmatprep.subr.mxu0 %v112
  %143 = vmatpush1.msra.mxu0 %v111
  %144 = vmatprep.subr.mxu0 %v110
  %145 = vmatpush1.msra.mxu0 %v109
  %146 = vmatprep.subr.mxu0 %v108
  %147 = vmatpush1.msra.mxu0 %v107
  %148 = vmatprep.subr.mxu0 %v106
  %149 = vmatpush1.msra.mxu0 %v105
  %150 = vmatprep.subr.mxu0 %v104
  %151 = vmatpush1.msra.mxu0 %v103
  %152 = vmatprep.subr.mxu0 %v102
  %153 = vmatpush1.msra.mxu0 %v101
  %154 = vmatprep.subr.mxu0 0.0
  %155 = vmatpush2.msra.mxu0 0.0
  %156 = vmatprep.subr.mxu0 0.0
  %157 = vmatpush2.msra.mxu0 0.0
  %158 = vmatprep.subr.mxu0 0.0
  %159 = vmatpush2.msra.mxu0 0.0
  %160 = vmatprep.subr.mxu0 0.0
  %161 = vmatpush2.msra.mxu0 0.0
  %162 = vmatprep.subr.mxu0 0.0
  %163 = vmatpush2.msra.mxu0 0.0
  %164 = vmatprep.subr.mxu0 0.0
  %165 = vmatpush2.msra.mxu0 0.0
  %166 = vmatprep.subr.mxu0 0.0
  %167 = vmatpush2.msra.mxu0 0.0
  %168 = vmatprep.subr.mxu0 0.0
  %169 = vmatpush2.msra.mxu0 0.0
  %170 = vmatprep.subr.mxu0 0.0
  %171 = vmatpush2.msra.mxu0 0.0
  %172 = vmatprep.subr.mxu0 0.0
  %173 = vmatpush2.msra.mxu0 0.0
  %174 = vmatprep.subr.mxu0 0.0
  %175 = vmatpush2.msra.mxu0 0.0
  %176 = vmatprep.subr.mxu0 0.0
  %177 = vmatpush2.msra.mxu0 0.0
  %178 = vmatprep.subr.mxu0 0.0
  %179 = vmatpush2.msra.mxu0 0.0
  %180 = vmatprep.subr.mxu0 0.0
  %181 = vmatpush2.msra.mxu0 0.0
  %182 = vmatprep.subr.mxu0 0.0
  %183 = vmatpush2.msra.mxu0 0.0
  %184 = vmatprep.subr.mxu0 0.0
  %185 = vmatpush2.msra.mxu0 0.0
  %186 = vmatprep.mubr.f32.mxu0 0.0
  %187 = vmatmul.mubr.f32.gmra.mxu0 %v120
  %v188 = vpop.f32.mrf.mxu0
  %v189 = vadd.f32 0.0, %v188
  %v190 = vpop.f32.mrf.mxu0
  %v191 = vadd.f32 0.0, %v190
  %192 = vdwg.mxu0
  %193 = vst [vmem:[%s2] sm:$0xff] %v189
  %194 = vst.msk [vmem:[%s2 + $0x8] sm:$0xff] %vm16, %v191
  // Predicated region
  $region10: #{_lambda_.4} parent=0 // pred_check
    _
  $region11: #{_lambda_.4} parent=0 // pred_check_branch
    %196 = sbr.rel (0) target = $region13
  $region12: #{_lambda_.4} parent=0 // pred_region
    _
  $region13: #{_lambda_.4} parent=0 // pred_fallthru
    _
  // Predicated region
  $region14: #{_lambda_.4} parent=0 // pred_check
    _
  $region15: #{_lambda_.4} parent=0 // pred_check_branch
    %198 = sbr.rel (0) target = $region17
  $region16: #{_lambda_.4} parent=0 // pred_region
    _
  $region17: #{_lambda_.4} parent=0 // pred_fallthru
    _

// kernel: _lambda_.3
$region0: #{_lambda_.3}
  #allocation0 [shape = 'u32[]', space=smem, size = 0x4, offset = 0x4, fixed_abs, tag = 'smem constant byte address 0x4 - core index']
  #allocation1 [shape = 'u32[144,128]{1,0:T(1,128)}', space=vmem, size = 0x12000, scoped, tag = 'internal scratch']
  #allocation2 [shape = 'f32[72,578]{1,0:T(8,128)}', space=vmem, size = 0x2d000, scoped, tag = 'scratch operand']
  %s0 = inlined_call_operand.vmem [shape: f32[8,614], index: 0, kind: input, shape index: {}]
  %s1 = inlined_call_operand.vmem [shape: f32[8,72], index: 1, kind: input, shape index: {}]
  %s2 = inlined_call_operand.vmem [shape: f32[8,578], index: 2, kind: output, shape index: {}]
  %s3 = sld [smem:[#allocation0]]
  $region18: #{_lambda_.3} parent=0
    _
  %s5 = ssub.s32 1, %s3
  %s6 = scalar_select 0, %s5, %s3
  // Predicated region
  $region2: #{_lambda_.3} parent=0 // pred_check
    _
  $region3: #{_lambda_.3} parent=0 // pred_check_branch
    %8 = sbr.rel (0) target = $region5
  $region4: #{_lambda_.3} parent=0 // pred_region
    _
  $region5: #{_lambda_.3} parent=0 // pred_fallthru
    _
  // Predicated region
  $region6: #{_lambda_.3} parent=0 // pred_check
    _
  $region7: #{_lambda_.3} parent=0 // pred_check_branch
    %10 = sbr.rel (0) target = $region9
  $region8: #{_lambda_.3} parent=0 // pred_region
    _
  $region9: #{_lambda_.3} parent=0 // pred_fallthru
    _
  %v11 = vld [vmem:[%s0] sm:$0xff]
  %v12 = vld [vmem:[%s0 + $0x8] sm:$0xff]
  %v13 = vld [vmem:[%s0 + $0x10] sm:$0xff]
  %v14 = vld [vmem:[%s0 + $0x18] sm:$0xff]
  %v15 = vld [vmem:[%s0 + $0x20] sm:$0xff]
  %v16 = vmax.f32 %v11, 0.0
  %v17 = vmax.f32 %v12, 0.0
  %v18 = vmax.f32 %v13, 0.0
  %v19 = vmax.f32 %v14, 0.0
  %v20 = vmax.f32 %v15, 0.0
  %21 = vst [vmem:[#allocation2] sm:$0xff] %v16
  %22 = vst [vmem:[#allocation2 + $0x8] sm:$0xff] %v17
  %23 = vst [vmem:[#allocation2 + $0x10] sm:$0xff] %v18
  %24 = vst [vmem:[#allocation2 + $0x18] sm:$0xff] %v19
  %vm25 = vcmask 539648
  %26 = vst.msk [vmem:[#allocation2 + $0x20] sm:$0xff] %vm25, %v20
  %32 = vrot.lane.b32.xlu0 %v16, 127
  %v33 = vpop.permute.xlu0 %32
  %34 = vrot.lane.b32.xlu0 %v17, 127
  %v35 = vpop.permute.xlu0 %34
  %36 = vrot.lane.b32.xlu0 %v18, 127
  %v37 = vpop.permute.xlu0 %36
  %38 = vrot.lane.b32.xlu0 %v19, 127
  %v39 = vpop.permute.xlu0 %38
  %40 = vrot.lane.b32.xlu0 %v20, 127
  %v41 = vpop.permute.xlu0 %40
  %vm42 = vcmask 1039360
  %v43 = vsel %vm42, %v33, %v35
  %v44 = vsel %vm42, %v35, %v37
  %v45 = vsel %vm42, %v37, %v39
  %v46 = vsel %vm42, %v39, %v41
  %52 = vst [vmem:[#allocation2 + $0x28] sm:$0xff] %v43
  %53 = vst [vmem:[#allocation2 + $0x30] sm:$0xff] %v44
  %54 = vst [vmem:[#allocation2 + $0x38] sm:$0xff] %v45
  %55 = vst [vmem:[#allocation2 + $0x40] sm:$0xff] %v46
  %56 = vst.msk [vmem:[#allocation2 + $0x48] sm:$0xff] %vm25, %v41
  %57 = vrot.lane.b32.xlu0 %v16, 126
  %v58 = vpop.permute.xlu0 %57
  %59 = vrot.lane.b32.xlu0 %v17, 126
  %v60 = vpop.permute.xlu0 %59
  %61 = vrot.lane.b32.xlu0 %v18, 126
  %v62 = vpop.permute.xlu0 %61
  %63 = vrot.lane.b32.xlu0 %v19, 126
  %v64 = vpop.permute.xlu0 %63
  %65 = vrot.lane.b32.xlu0 %v20, 126
  %v66 = vpop.permute.xlu0 %65
  %vm67 = vcmask 1031168
  %v68 = vsel %vm67, %v58, %v60
  %v69 = vsel %vm67, %v60, %v62
  %v70 = vsel %vm67, %v62, %v64
  %v71 = vsel %vm67, %v64, %v66
  %77 = vst [vmem:[#allocation2 + $0x50] sm:$0xff] %v68
  %78 = vst [vmem:[#allocation2 + $0x58] sm:$0xff] %v69
  %79 = vst [vmem:[#allocation2 + $0x60] sm:$0xff] %v70
  %80 = vst [vmem:[#allocation2 + $0x68] sm:$0xff] %v71
  %81 = vst.msk [vmem:[#allocation2 + $0x70] sm:$0xff] %vm25, %v66
  %82 = vrot.lane.b32.xlu0 %v16, 111
  %v83 = vpop.permute.xlu0 %82
  %84 = vrot.lane.b32.xlu0 %v17, 111
  %v85 = vpop.permute.xlu0 %84
  %86 = vrot.lane.b32.xlu0 %v18, 111
  %v87 = vpop.permute.xlu0 %86
  %88 = vrot.lane.b32.xlu0 %v19, 111
  %v89 = vpop.permute.xlu0 %88
  %90 = vrot.lane.b32.xlu0 %v20, 111
  %v91 = vpop.permute.xlu0 %90
  %vm92 = vcmask 908288
  %v93 = vsel %vm92, %v83, %v85
  %v94 = vsel %vm92, %v85, %v87
  %v95 = vsel %vm92, %v87, %v89
  %v96 = vsel %vm92, %v89, %v91
  %102 = vst [vmem:[#allocation2 + $0x78] sm:$0xff] %v93
  %103 = vst [vmem:[#allocation2 + $0x80] sm:$0xff] %v94
  %104 = vst [vmem:[#allocation2 + $0x88] sm:$0xff] %v95
  %105 = vst [vmem:[#allocation2 + $0x90] sm:$0xff] %v96
  %106 = vst.msk [vmem:[#allocation2 + $0x98] sm:$0xff] %vm25, %v91
  %107 = vrot.lane.b32.xlu0 %v16, 110
  %v108 = vpop.permute.xlu0 %107
  %109 = vrot.lane.b32.xlu0 %v17, 110
  %v110 = vpop.permute.xlu0 %109
  %111 = vrot.lane.b32.xlu0 %v18, 110
  %v112 = vpop.permute.xlu0 %111
  %113 = vrot.lane.b32.xlu0 %v19, 110
  %v114 = vpop.permute.xlu0 %113
  %115 = vrot.lane.b32.xlu0 %v20, 110
  %v116 = vpop.permute.xlu0 %115
  %vm117 = vcmask 900096
  %v118 = vsel %vm117, %v108, %v110
  %v119 = vsel %vm117, %v110, %v112
  %v120 = vsel %vm117, %v112, %v114
  %v121 = vsel %vm117, %v114, %v116
  %127 = vst [vmem:[#allocation2 + $0xa0] sm:$0xff] %v118
  %128 = vst [vmem:[#allocation2 + $0xa8] sm:$0xff] %v119
  %129 = vst [vmem:[#allocation2 + $0xb0] sm:$0xff] %v120
  %130 = vst [vmem:[#allocation2 + $0xb8] sm:$0xff] %v121
  %131 = vst.msk [vmem:[#allocation2 + $0xc0] sm:$0xff] %vm25, %v116
  %132 = vrot.lane.b32.xlu0 %v16, 109
  %v133 = vpop.permute.xlu0 %132
  %134 = vrot.lane.b32.xlu0 %v17, 109
  %v135 = vpop.permute.xlu0 %134
  %136 = vrot.lane.b32.xlu0 %v18, 109
  %v137 = vpop.permute.xlu0 %136
  %138 = vrot.lane.b32.xlu0 %v19, 109
  %v139 = vpop.permute.xlu0 %138
  %140 = vrot.lane.b32.xlu0 %v20, 109
  %v141 = vpop.permute.xlu0 %140
  %vm142 = vcmask 891904
  %v143 = vsel %vm142, %v133, %v135
  %v144 = vsel %vm142, %v135, %v137
  %v145 = vsel %vm142, %v137, %v139
  %v146 = vsel %vm142, %v139, %v141
  %152 = vst [vmem:[#allocation2 + $0xc8] sm:$0xff] %v143
  %153 = vst [vmem:[#allocation2 + $0xd0] sm:$0xff] %v144
  %154 = vst [vmem:[#allocation2 + $0xd8] sm:$0xff] %v145
  %155 = vst [vmem:[#allocation2 + $0xe0] sm:$0xff] %v146
  %156 = vst.msk [vmem:[#allocation2 + $0xe8] sm:$0xff] %vm25, %v141
  %157 = vrot.lane.b32.xlu0 %v16, 94
  %v158 = vpop.permute.xlu0 %157
  %159 = vrot.lane.b32.xlu0 %v17, 94
  %v160 = vpop.permute.xlu0 %159
  %161 = vrot.lane.b32.xlu0 %v18, 94
  %v162 = vpop.permute.xlu0 %161
  %163 = vrot.lane.b32.xlu0 %v19, 94
  %v164 = vpop.permute.xlu0 %163
  %165 = vrot.lane.b32.xlu0 %v20, 94
  %v166 = vpop.permute.xlu0 %165
  %vm167 = vcmask 769024
  %v168 = vsel %vm167, %v158, %v160
  %v169 = vsel %vm167, %v160, %v162
  %v170 = vsel %vm167, %v162, %v164
  %v171 = vsel %vm167, %v164, %v166
  %177 = vst [vmem:[#allocation2 + $0xf0] sm:$0xff] %v168
  %178 = vst [vmem:[#allocation2 + $0xf8] sm:$0xff] %v169
  %179 = vst [vmem:[#allocation2 + $0x100] sm:$0xff] %v170
  %180 = vst [vmem:[#allocation2 + $0x108] sm:$0xff] %v171
  %181 = vst.msk [vmem:[#allocation2 + $0x110] sm:$0xff] %vm25, %v166
  %182 = vrot.lane.b32.xlu0 %v16, 93
  %v183 = vpop.permute.xlu0 %182
  %184 = vrot.lane.b32.xlu0 %v17, 93
  %v185 = vpop.permute.xlu0 %184
  %186 = vrot.lane.b32.xlu0 %v18, 93
  %v187 = vpop.permute.xlu0 %186
  %188 = vrot.lane.b32.xlu0 %v19, 93
  %v189 = vpop.permute.xlu0 %188
  %190 = vrot.lane.b32.xlu0 %v20, 93
  %v191 = vpop.permute.xlu0 %190
  %vm192 = vcmask 760832
  %v193 = vsel %vm192, %v183, %v185
  %v194 = vsel %vm192, %v185, %v187
  %v195 = vsel %vm192, %v187, %v189
  %v196 = vsel %vm192, %v189, %v191
  %202 = vst [vmem:[#allocation2 + $0x118] sm:$0xff] %v193
  %203 = vst [vmem:[#allocation2 + $0x120] sm:$0xff] %v194
  %204 = vst [vmem:[#allocation2 + $0x128] sm:$0xff] %v195
  %205 = vst [vmem:[#allocation2 + $0x130] sm:$0xff] %v196
  %206 = vst.msk [vmem:[#allocation2 + $0x138] sm:$0xff] %vm25, %v191
  %207 = vrot.lane.b32.xlu0 %v16, 92
  %v208 = vpop.permute.xlu0 %207
  %209 = vrot.lane.b32.xlu0 %v17, 92
  %v210 = vpop.permute.xlu0 %209
  %211 = vrot.lane.b32.xlu0 %v18, 92
  %v212 = vpop.permute.xlu0 %211
  %213 = vrot.lane.b32.xlu0 %v19, 92
  %v214 = vpop.permute.xlu0 %213
  %215 = vrot.lane.b32.xlu0 %v20, 92
  %v216 = vpop.permute.xlu0 %215
  %vm217 = vcmask 752640
  %v218 = vsel %vm217, %v208, %v210
  %v219 = vsel %vm217, %v210, %v212
  %v220 = vsel %vm217, %v212, %v214
  %v221 = vsel %vm217, %v214, %v216
  %227 = vst [vmem:[#allocation2 + $0x140] sm:$0xff] %v218
  %228 = vst [vmem:[#allocation2 + $0x148] sm:$0xff] %v219
  %229 = vst [vmem:[#allocation2 + $0x150] sm:$0xff] %v220
  %230 = vst [vmem:[#allocation2 + $0x158] sm:$0xff] %v221
  %231 = vst.msk [vmem:[#allocation2 + $0x160] sm:$0xff] %vm25, %v216
  %v232 = vld [vmem:[%s1] sm:$0xff]
  %v233 = vld [vmem:[#allocation2] sm:$0xff]
  %v234 = vld [vmem:[#allocation2 + $0x8] sm:$0xff]
  %v235 = vld [vmem:[#allocation2 + $0x10] sm:$0xff]
  %v236 = vld [vmem:[#allocation2 + $0x18] sm:$0xff]
  %v237 = vld [vmem:[#allocation2 + $0x20] sm:$0xff]
  %v238 = vld [vmem:[#allocation2 + $0x28] sm:$0xff]
  %v239 = vld [vmem:[#allocation2 + $0x30] sm:$0xff]
  %v240 = vld [vmem:[#allocation2 + $0x38] sm:$0xff]
  %v241 = vld [vmem:[#allocation2 + $0x40] sm:$0xff]
  %v242 = vld [vmem:[#allocation2 + $0x48] sm:$0xff]
  %v243 = vld [vmem:[#allocation2 + $0x50] sm:$0xff]
  %v244 = vld [vmem:[#allocation2 + $0x58] sm:$0xff]
  %v245 = vld [vmem:[#allocation2 + $0x60] sm:$0xff]
  %v246 = vld [vmem:[#allocation2 + $0x68] sm:$0xff]
  %v247 = vld [vmem:[#allocation2 + $0x70] sm:$0xff]
  %v248 = vld [vmem:[#allocation2 + $0x78] sm:$0xff]
  %v249 = vld [vmem:[#allocation2 + $0x80] sm:$0xff]
  %v250 = vld [vmem:[#allocation2 + $0x88] sm:$0xff]
  %v251 = vld [vmem:[#allocation2 + $0x90] sm:$0xff]
  %v252 = vld [vmem:[#allocation2 + $0x98] sm:$0xff]
  %v253 = vld [vmem:[#allocation2 + $0xa0] sm:$0xff]
  %v254 = vld [vmem:[#allocation2 + $0xa8] sm:$0xff]
  %v255 = vld [vmem:[#allocation2 + $0xb0] sm:$0xff]
  %v256 = vld [vmem:[#allocation2 + $0xb8] sm:$0xff]
  %v257 = vld [vmem:[#allocation2 + $0xc0] sm:$0xff]
  %v258 = vld [vmem:[#allocation2 + $0xc8] sm:$0xff]
  %v259 = vld [vmem:[#allocation2 + $0xd0] sm:$0xff]
  %v260 = vld [vmem:[#allocation2 + $0xd8] sm:$0xff]
  %v261 = vld [vmem:[#allocation2 + $0xe0] sm:$0xff]
  %v262 = vld [vmem:[#allocation2 + $0xe8] sm:$0xff]
  %v263 = vld [vmem:[#allocation2 + $0xf0] sm:$0xff]
  %v264 = vld [vmem:[#allocation2 + $0xf8] sm:$0xff]
  %v265 = vld [vmem:[#allocation2 + $0x100] sm:$0xff]
  %v266 = vld [vmem:[#allocation2 + $0x108] sm:$0xff]
  %v267 = vld [vmem:[#allocation2 + $0x110] sm:$0xff]
  %v268 = vld [vmem:[#allocation2 + $0x118] sm:$0xff]
  %v269 = vld [vmem:[#allocation2 + $0x120] sm:$0xff]
  %v270 = vld [vmem:[#allocation2 + $0x128] sm:$0xff]
  %v271 = vld [vmem:[#allocation2 + $0x130] sm:$0xff]
  %v272 = vld [vmem:[#allocation2 + $0x138] sm:$0xff]
  %v273 = vld [vmem:[#allocation2 + $0x140] sm:$0xff]
  %v274 = vld [vmem:[#allocation2 + $0x148] sm:$0xff]
  %v275 = vld [vmem:[#allocation2 + $0x150] sm:$0xff]
  %v276 = vld [vmem:[#allocation2 + $0x158] sm:$0xff]
  %v277 = vld [vmem:[#allocation2 + $0x160] sm:$0xff]
  %vm278 = vcmask 588800
  %v280 = vsel %vm278, %v232, 0
  %282 = vmatprep.subr.mxu0 0.0
  %283 = vmatpush1.msra.mxu0 0.0
  %284 = vmatprep.subr.mxu0 0.0
  %285 = vmatpush1.msra.mxu0 0.0
  %286 = vmatprep.subr.mxu0 0.0
  %287 = vmatpush1.msra.mxu0 0.0
  %288 = vmatprep.subr.mxu0 0.0
  %289 = vmatpush1.msra.mxu0 0.0
  %290 = vmatprep.subr.mxu0 0.0
  %291 = vmatpush1.msra.mxu0 0.0
  %292 = vmatprep.subr.mxu0 0.0
  %293 = vmatpush1.msra.mxu0 0.0
  %294 = vmatprep.subr.mxu0 0.0
  %295 = vmatpush1.msra.mxu0 0.0
  %296 = vmatprep.subr.mxu0 %v274
  %297 = vmatpush1.msra.mxu0 %v273
  %298 = vmatprep.subr.mxu0 %v269
  %299 = vmatpush1.msra.mxu0 %v268
  %300 = vmatprep.subr.mxu0 %v264
  %301 = vmatpush1.msra.mxu0 %v263
  %302 = vmatprep.subr.mxu0 %v259
  %303 = vmatpush1.msra.mxu0 %v258
  %304 = vmatprep.subr.mxu0 %v254
  %305 = vmatpush1.msra.mxu0 %v253
  %306 = vmatprep.subr.mxu0 %v249
  %307 = vmatpush1.msra.mxu0 %v248
  %308 = vmatprep.subr.mxu0 %v244
  %309 = vmatpush1.msra.mxu0 %v243
  %310 = vmatprep.subr.mxu0 %v239
  %311 = vmatpush1.msra.mxu0 %v238
  %312 = vmatprep.subr.mxu0 %v234
  %313 = vmatpush1.msra.mxu0 %v233
  %314 = vmatprep.subr.mxu0 0.0
  %315 = vmatpush2.msra.mxu0 0.0
  %316 = vmatprep.subr.mxu0 0.0
  %317 = vmatpush2.msra.mxu0 0.0
  %318 = vmatprep.subr.mxu0 0.0
  %319 = vmatpush2.msra.mxu0 0.0
  %320 = vmatprep.subr.mxu0 0.0
  %321 = vmatpush2.msra.mxu0 0.0
  %322 = vmatprep.subr.mxu0 0.0
  %323 = vmatpush2.msra.mxu0 0.0
  %324 = vmatprep.subr.mxu0 0.0
  %325 = vmatpush2.msra.mxu0 0.0
  %326 = vmatprep.subr.mxu0 0.0
  %327 = vmatpush2.msra.mxu0 0.0
  %328 = vmatprep.subr.mxu0 0.0
  %329 = vmatpush2.msra.mxu0 0.0
  %330 = vmatprep.subr.mxu0 0.0
  %331 = vmatpush2.msra.mxu0 0.0
  %332 = vmatprep.subr.mxu0 0.0
  %333 = vmatpush2.msra.mxu0 0.0
  %334 = vmatprep.subr.mxu0 0.0
  %335 = vmatpush2.msra.mxu0 0.0
  %336 = vmatprep.subr.mxu0 0.0
  %337 = vmatpush2.msra.mxu0 0.0
  %338 = vmatprep.subr.mxu0 0.0
  %339 = vmatpush2.msra.mxu0 0.0
  %340 = vmatprep.subr.mxu0 0.0
  %341 = vmatpush2.msra.mxu0 0.0
  %342 = vmatprep.subr.mxu0 0.0
  %343 = vmatpush2.msra.mxu0 0.0
  %344 = vmatprep.subr.mxu0 0.0
  %345 = vmatpush2.msra.mxu0 0.0
  %346 = vmatprep.mubr.f32.mxu0 0.0
  %347 = vmatmul.mubr.f32.gmra.mxu0 %v280
  %v348 = vpop.f32.mrf.mxu0
  %v349 = vadd.f32 0.0, %v348
  %v350 = vpop.f32.mrf.mxu0
  %v351 = vadd.f32 0.0, %v350
  %352 = vdwg.mxu0
  %353 = vmatprep.subr.mxu0 0.0
  %354 = vmatpush1.msra.mxu0 0.0
  %355 = vmatprep.subr.mxu0 0.0
  %356 = vmatpush1.msra.mxu0 0.0
  %357 = vmatprep.subr.mxu0 0.0
  %358 = vmatpush1.msra.mxu0 0.0
  %359 = vmatprep.subr.mxu0 0.0
  %360 = vmatpush1.msra.mxu0 0.0
  %361 = vmatprep.subr.mxu0 0.0
  %362 = vmatpush1.msra.mxu0 0.0
  %363 = vmatprep.subr.mxu0 0.0
  %364 = vmatpush1.msra.mxu0 0.0
  %365 = vmatprep.subr.mxu0 0.0
  %366 = vmatpush1.msra.mxu0 0.0
  %367 = vmatprep.subr.mxu0 %v276
  %368 = vmatpush1.msra.mxu0 %v275
  %369 = vmatprep.subr.mxu0 %v271
  %370 = vmatpush1.msra.mxu0 %v270
  %371 = vmatprep.subr.mxu0 %v266
  %372 = vmatpush1.msra.mxu0 %v265
  %373 = vmatprep.subr.mxu0 %v261
  %374 = vmatpush1.msra.mxu0 %v260
  %375 = vmatprep.subr.mxu0 %v256
  %376 = vmatpush1.msra.mxu0 %v255
  %377 = vmatprep.subr.mxu0 %v251
  %378 = vmatpush1.msra.mxu0 %v250
  %379 = vmatprep.subr.mxu0 %v246
  %380 = vmatpush1.msra.mxu0 %v245
  %381 = vmatprep.subr.mxu0 %v241
  %382 = vmatpush1.msra.mxu0 %v240
  %383 = vmatprep.subr.mxu0 %v236
  %384 = vmatpush1.msra.mxu0 %v235
  %385 = vmatprep.subr.mxu0 0.0
  %386 = vmatpush2.msra.mxu0 0.0
  %387 = vmatprep.subr.mxu0 0.0
  %388 = vmatpush2.msra.mxu0 0.0
  %389 = vmatprep.subr.mxu0 0.0
  %390 = vmatpush2.msra.mxu0 0.0
  %391 = vmatprep.subr.mxu0 0.0
  %392 = vmatpush2.msra.mxu0 0.0
  %393 = vmatprep.subr.mxu0 0.0
  %394 = vmatpush2.msra.mxu0 0.0
  %395 = vmatprep.subr.mxu0 0.0
  %396 = vmatpush2.msra.mxu0 0.0
  %397 = vmatprep.subr.mxu0 0.0
  %398 = vmatpush2.msra.mxu0 0.0
  %399 = vmatprep.subr.mxu0 0.0
  %400 = vmatpush2.msra.mxu0 0.0
  %401 = vmatprep.subr.mxu0 0.0
  %402 = vmatpush2.msra.mxu0 0.0
  %403 = vmatprep.subr.mxu0 0.0
  %404 = vmatpush2.msra.mxu0 0.0
  %405 = vmatprep.subr.mxu0 0.0
  %406 = vmatpush2.msra.mxu0 0.0
  %407 = vmatprep.subr.mxu0 0.0
  %408 = vmatpush2.msra.mxu0 0.0
  %409 = vmatprep.subr.mxu0 0.0
  %410 = vmatpush2.msra.mxu0 0.0
  %411 = vmatprep.subr.mxu0 0.0
  %412 = vmatpush2.msra.mxu0 0.0
  %413 = vmatprep.subr.mxu0 0.0
  %414 = vmatpush2.msra.mxu0 0.0
  %415 = vmatprep.subr.mxu0 0.0
  %416 = vmatpush2.msra.mxu0 0.0
  %417 = vmatprep.mubr.f32.mxu0 0.0
  %418 = vmatmul.mubr.f32.gmra.mxu0 %v280
  %v419 = vpop.f32.mrf.mxu0
  %v420 = vadd.f32 0.0, %v419
  %v421 = vpop.f32.mrf.mxu0
  %v422 = vadd.f32 0.0, %v421
  %423 = vdwg.mxu0
  %424 = vmatprep.subr.mxu0 0.0
  %425 = vmatpush1.msra.mxu0 0.0
  %426 = vmatprep.subr.mxu0 0.0
  %427 = vmatpush1.msra.mxu0 0.0
  %428 = vmatprep.subr.mxu0 0.0
  %429 = vmatpush1.msra.mxu0 0.0
  %430 = vmatprep.subr.mxu0 0.0
  %431 = vmatpush1.msra.mxu0 0.0
  %432 = vmatprep.subr.mxu0 0.0
  %433 = vmatpush1.msra.mxu0 0.0
  %434 = vmatprep.subr.mxu0 0.0
  %435 = vmatpush1.msra.mxu0 0.0
  %436 = vmatprep.subr.mxu0 0.0
  %437 = vmatpush1.msra.mxu0 0.0
  %438 = vmatprep.subr.mxu0 0.0
  %439 = vmatpush1.msra.mxu0 %v277
  %440 = vmatprep.subr.mxu0 0.0
  %441 = vmatpush1.msra.mxu0 %v272
  %442 = vmatprep.subr.mxu0 0.0
  %443 = vmatpush1.msra.mxu0 %v267
  %444 = vmatprep.subr.mxu0 0.0
  %445 = vmatpush1.msra.mxu0 %v262
  %446 = vmatprep.subr.mxu0 0.0
  %447 = vmatpush1.msra.mxu0 %v257
  %448 = vmatprep.subr.mxu0 0.0
  %449 = vmatpush1.msra.mxu0 %v252
  %450 = vmatprep.subr.mxu0 0.0
  %451 = vmatpush1.msra.mxu0 %v247
  %452 = vmatprep.subr.mxu0 0.0
  %453 = vmatpush1.msra.mxu0 %v242
  %454 = vmatprep.subr.mxu0 0.0
  %455 = vmatpush1.msra.mxu0 %v237
  %456 = vmatprep.subr.mxu0 0.0
  %457 = vmatpush2.msra.mxu0 0.0
  %458 = vmatprep.subr.mxu0 0.0
  %459 = vmatpush2.msra.mxu0 0.0
  %460 = vmatprep.subr.mxu0 0.0
  %461 = vmatpush2.msra.mxu0 0.0
  %462 = vmatprep.subr.mxu0 0.0
  %463 = vmatpush2.msra.mxu0 0.0
  %464 = vmatprep.subr.mxu0 0.0
  %465 = vmatpush2.msra.mxu0 0.0
  %466 = vmatprep.subr.mxu0 0.0
  %467 = vmatpush2.msra.mxu0 0.0
  %468 = vmatprep.subr.mxu0 0.0
  %469 = vmatpush2.msra.mxu0 0.0
  %470 = vmatprep.subr.mxu0 0.0
  %471 = vmatpush2.msra.mxu0 0.0
  %472 = vmatprep.subr.mxu0 0.0
  %473 = vmatpush2.msra.mxu0 0.0
  %474 = vmatprep.subr.mxu0 0.0
  %475 = vmatpush2.msra.mxu0 0.0
  %476 = vmatprep.subr.mxu0 0.0
  %477 = vmatpush2.msra.mxu0 0.0
  %478 = vmatprep.subr.mxu0 0.0
  %479 = vmatpush2.msra.mxu0 0.0
  %480 = vmatprep.subr.mxu0 0.0
  %481 = vmatpush2.msra.mxu0 0.0
  %482 = vmatprep.subr.mxu0 0.0
  %483 = vmatpush2.msra.mxu0 0.0
  %484 = vmatprep.subr.mxu0 0.0
  %485 = vmatpush2.msra.mxu0 0.0
  %486 = vmatprep.subr.mxu0 0.0
  %487 = vmatpush2.msra.mxu0 0.0
  %488 = vmatprep.mubr.f32.mxu0 0.0
  %489 = vmatmul.mubr.f32.gmra.mxu0 %v280
  %v490 = vpop.f32.mrf.mxu0
  %v491 = vadd.f32 0.0, %v490
  %v492 = vpop.f32.mrf.mxu0
  %493 = vdwg.mxu0
  %494 = vst [vmem:[%s2] sm:$0xff] %v349
  %495 = vst [vmem:[%s2 + $0x8] sm:$0xff] %v351
  %496 = vst [vmem:[%s2 + $0x10] sm:$0xff] %v420
  %497 = vst [vmem:[%s2 + $0x18] sm:$0xff] %v422
  %498 = vst.msk [vmem:[%s2 + $0x20] sm:$0xff] %vm25, %v491
  // Predicated region
  $region10: #{_lambda_.3} parent=0 // pred_check
    _
  $region11: #{_lambda_.3} parent=0 // pred_check_branch
    %500 = sbr.rel (0) target = $region13
  $region12: #{_lambda_.3} parent=0 // pred_region
    _
  $region13: #{_lambda_.3} parent=0 // pred_fallthru
    _
  // Predicated region
  $region14: #{_lambda_.3} parent=0 // pred_check
    _
  $region15: #{_lambda_.3} parent=0 // pred_check_branch
    %502 = sbr.rel (0) target = $region17
  $region16: #{_lambda_.3} parent=0 // pred_region
    _
  $region17: #{_lambda_.3} parent=0 // pred_fallthru
    _

// kernel: _lambda_.5
$region0: #{_lambda_.5}
  #allocation0 [shape = 'u32[]', space=smem, size = 0x4, offset = 0x4, fixed_abs, tag = 'smem constant byte address 0x4 - core index']
  #allocation1 [shape = 'u32[144,128]{1,0:T(1,128)}', space=vmem, size = 0x12000, scoped, tag = 'internal scratch']
  #allocation2 [shape = 'f32[72,578]{1,0:T(8,128)}', space=vmem, size = 0x2d000, scoped, tag = 'scratch operand']
  %s0 = inlined_call_operand.vmem [shape: f32[8,614], index: 0, kind: input, shape index: {}]
  %s1 = inlined_call_operand.vmem [shape: f32[8,72], index: 1, kind: input, shape index: {}]
  %s2 = inlined_call_operand.vmem [shape: f32[8,578], index: 2, kind: input, shape index: {}]
  %s3 = inlined_call_operand.vmem [shape: f32[8,578], index: 3, kind: output, shape index: {}]
  %s4 = sld [smem:[#allocation0]]
  $region22: #{_lambda_.5} parent=0
    _
  %s6 = ssub.s32 1, %s4
  %s7 = scalar_select 0, %s6, %s4
  // Predicated region
  $region2: #{_lambda_.5} parent=0 // pred_check
    _
  $region3: #{_lambda_.5} parent=0 // pred_check_branch
    %9 = sbr.rel (0) target = $region5
  $region4: #{_lambda_.5} parent=0 // pred_region
    _
  $region5: #{_lambda_.5} parent=0 // pred_fallthru
    _
  // Predicated region
  $region6: #{_lambda_.5} parent=0 // pred_check
    _
  $region7: #{_lambda_.5} parent=0 // pred_check_branch
    %11 = sbr.rel (0) target = $region9
  $region8: #{_lambda_.5} parent=0 // pred_region
    _
  $region9: #{_lambda_.5} parent=0 // pred_fallthru
    _
  // Predicated region
  $region10: #{_lambda_.5} parent=0 // pred_check
    _
  $region11: #{_lambda_.5} parent=0 // pred_check_branch
    %13 = sbr.rel (0) target = $region13
  $region12: #{_lambda_.5} parent=0 // pred_region
    _
  $region13: #{_lambda_.5} parent=0 // pred_fallthru
    _
  %v14 = vld [vmem:[%s0] sm:$0xff]
  %v15 = vld [vmem:[%s0 + $0x8] sm:$0xff]
  %v16 = vld [vmem:[%s0 + $0x10] sm:$0xff]
  %v17 = vld [vmem:[%s0 + $0x18] sm:$0xff]
  %v18 = vld [vmem:[%s0 + $0x20] sm:$0xff]
  %v19 = vmax.f32 %v14, 0.0
  %v20 = vmax.f32 %v15, 0.0
  %v21 = vmax.f32 %v16, 0.0
  %v22 = vmax.f32 %v17, 0.0
  %v23 = vmax.f32 %v18, 0.0
  %24 = vst [vmem:[#allocation2] sm:$0xff] %v19
  %25 = vst [vmem:[#allocation2 + $0x8] sm:$0xff] %v20
  %26 = vst [vmem:[#allocation2 + $0x10] sm:$0xff] %v21
  %27 = vst [vmem:[#allocation2 + $0x18] sm:$0xff] %v22
  %vm28 = vcmask 539648
  %29 = vst.msk [vmem:[#allocation2 + $0x20] sm:$0xff] %vm28, %v23
  %35 = vrot.lane.b32.xlu0 %v19, 127
  %v36 = vpop.permute.xlu0 %35
  %37 = vrot.lane.b32.xlu0 %v20, 127
  %v38 = vpop.permute.xlu0 %37
  %39 = vrot.lane.b32.xlu0 %v21, 127
  %v40 = vpop.permute.xlu0 %39
  %41 = vrot.lane.b32.xlu0 %v22, 127
  %v42 = vpop.permute.xlu0 %41
  %43 = vrot.lane.b32.xlu0 %v23, 127
  %v44 = vpop.permute.xlu0 %43
  %vm45 = vcmask 1039360
  %v46 = vsel %vm45, %v36, %v38
  %v47 = vsel %vm45, %v38, %v40
  %v48 = vsel %vm45, %v40, %v42
  %v49 = vsel %vm45, %v42, %v44
  %55 = vst [vmem:[#allocation2 + $0x28] sm:$0xff] %v46
  %56 = vst [vmem:[#allocation2 + $0x30] sm:$0xff] %v47
  %57 = vst [vmem:[#allocation2 + $0x38] sm:$0xff] %v48
  %58 = vst [vmem:[#allocation2 + $0x40] sm:$0xff] %v49
  %59 = vst.msk [vmem:[#allocation2 + $0x48] sm:$0xff] %vm28, %v44
  %60 = vrot.lane.b32.xlu0 %v19, 126
  %v61 = vpop.permute.xlu0 %60
  %62 = vrot.lane.b32.xlu0 %v20, 126
  %v63 = vpop.permute.xlu0 %62
  %64 = vrot.lane.b32.xlu0 %v21, 126
  %v65 = vpop.permute.xlu0 %64
  %66 = vrot.lane.b32.xlu0 %v22, 126
  %v67 = vpop.permute.xlu0 %66
  %68 = vrot.lane.b32.xlu0 %v23, 126
  %v69 = vpop.permute.xlu0 %68
  %vm70 = vcmask 1031168
  %v71 = vsel %vm70, %v61, %v63
  %v72 = vsel %vm70, %v63, %v65
  %v73 = vsel %vm70, %v65, %v67
  %v74 = vsel %vm70, %v67, %v69
  %80 = vst [vmem:[#allocation2 + $0x50] sm:$0xff] %v71
  %81 = vst [vmem:[#allocation2 + $0x58] sm:$0xff] %v72
  %82 = vst [vmem:[#allocation2 + $0x60] sm:$0xff] %v73
  %83 = vst [vmem:[#allocation2 + $0x68] sm:$0xff] %v74
  %84 = vst.msk [vmem:[#allocation2 + $0x70] sm:$0xff] %vm28, %v69
  %85 = vrot.lane.b32.xlu0 %v19, 111
  %v86 = vpop.permute.xlu0 %85
  %87 = vrot.lane.b32.xlu0 %v20, 111
  %v88 = vpop.permute.xlu0 %87
  %89 = vrot.lane.b32.xlu0 %v21, 111
  %v90 = vpop.permute.xlu0 %89
  %91 = vrot.lane.b32.xlu0 %v22, 111
  %v92 = vpop.permute.xlu0 %91
  %93 = vrot.lane.b32.xlu0 %v23, 111
  %v94 = vpop.permute.xlu0 %93
  %vm95 = vcmask 908288
  %v96 = vsel %vm95, %v86, %v88
  %v97 = vsel %vm95, %v88, %v90
  %v98 = vsel %vm95, %v90, %v92
  %v99 = vsel %vm95, %v92, %v94
  %105 = vst [vmem:[#allocation2 + $0x78] sm:$0xff] %v96
  %106 = vst [vmem:[#allocation2 + $0x80] sm:$0xff] %v97
  %107 = vst [vmem:[#allocation2 + $0x88] sm:$0xff] %v98
  %108 = vst [vmem:[#allocation2 + $0x90] sm:$0xff] %v99
  %109 = vst.msk [vmem:[#allocation2 + $0x98] sm:$0xff] %vm28, %v94
  %110 = vrot.lane.b32.xlu0 %v19, 110
  %v111 = vpop.permute.xlu0 %110
  %112 = vrot.lane.b32.xlu0 %v20, 110
  %v113 = vpop.permute.xlu0 %112
  %114 = vrot.lane.b32.xlu0 %v21, 110
  %v115 = vpop.permute.xlu0 %114
  %116 = vrot.lane.b32.xlu0 %v22, 110
  %v117 = vpop.permute.xlu0 %116
  %118 = vrot.lane.b32.xlu0 %v23, 110
  %v119 = vpop.permute.xlu0 %118
  %vm120 = vcmask 900096
  %v121 = vsel %vm120, %v111, %v113
  %v122 = vsel %vm120, %v113, %v115
  %v123 = vsel %vm120, %v115, %v117
  %v124 = vsel %vm120, %v117, %v119
  %130 = vst [vmem:[#allocation2 + $0xa0] sm:$0xff] %v121
  %131 = vst [vmem:[#allocation2 + $0xa8] sm:$0xff] %v122
  %132 = vst [vmem:[#allocation2 + $0xb0] sm:$0xff] %v123
  %133 = vst [vmem:[#allocation2 + $0xb8] sm:$0xff] %v124
  %134 = vst.msk [vmem:[#allocation2 + $0xc0] sm:$0xff] %vm28, %v119
  %135 = vrot.lane.b32.xlu0 %v19, 109
  %v136 = vpop.permute.xlu0 %135
  %137 = vrot.lane.b32.xlu0 %v20, 109
  %v138 = vpop.permute.xlu0 %137
  %139 = vrot.lane.b32.xlu0 %v21, 109
  %v140 = vpop.permute.xlu0 %139
  %141 = vrot.lane.b32.xlu0 %v22, 109
  %v142 = vpop.permute.xlu0 %141
  %143 = vrot.lane.b32.xlu0 %v23, 109
  %v144 = vpop.permute.xlu0 %143
  %vm145 = vcmask 891904
  %v146 = vsel %vm145, %v136, %v138
  %v147 = vsel %vm145, %v138, %v140
  %v148 = vsel %vm145, %v140, %v142
  %v149 = vsel %vm145, %v142, %v144
  %155 = vst [vmem:[#allocation2 + $0xc8] sm:$0xff] %v146
  %156 = vst [vmem:[#allocation2 + $0xd0] sm:$0xff] %v147
  %157 = vst [vmem:[#allocation2 + $0xd8] sm:$0xff] %v148
  %158 = vst [vmem:[#allocation2 + $0xe0] sm:$0xff] %v149
  %159 = vst.msk [vmem:[#allocation2 + $0xe8] sm:$0xff] %vm28, %v144
  %160 = vrot.lane.b32.xlu0 %v19, 94
  %v161 = vpop.permute.xlu0 %160
  %162 = vrot.lane.b32.xlu0 %v20, 94
  %v163 = vpop.permute.xlu0 %162
  %164 = vrot.lane.b32.xlu0 %v21, 94
  %v165 = vpop.permute.xlu0 %164
  %166 = vrot.lane.b32.xlu0 %v22, 94
  %v167 = vpop.permute.xlu0 %166
  %168 = vrot.lane.b32.xlu0 %v23, 94
  %v169 = vpop.permute.xlu0 %168
  %vm170 = vcmask 769024
  %v171 = vsel %vm170, %v161, %v163
  %v172 = vsel %vm170, %v163, %v165
  %v173 = vsel %vm170, %v165, %v167
  %v174 = vsel %vm170, %v167, %v169
  %180 = vst [vmem:[#allocation2 + $0xf0] sm:$0xff] %v171
  %181 = vst [vmem:[#allocation2 + $0xf8] sm:$0xff] %v172
  %182 = vst [vmem:[#allocation2 + $0x100] sm:$0xff] %v173
  %183 = vst [vmem:[#allocation2 + $0x108] sm:$0xff] %v174
  %184 = vst.msk [vmem:[#allocation2 + $0x110] sm:$0xff] %vm28, %v169
  %185 = vrot.lane.b32.xlu0 %v19, 93
  %v186 = vpop.permute.xlu0 %185
  %187 = vrot.lane.b32.xlu0 %v20, 93
  %v188 = vpop.permute.xlu0 %187
  %189 = vrot.lane.b32.xlu0 %v21, 93
  %v190 = vpop.permute.xlu0 %189
  %191 = vrot.lane.b32.xlu0 %v22, 93
  %v192 = vpop.permute.xlu0 %191
  %193 = vrot.lane.b32.xlu0 %v23, 93
  %v194 = vpop.permute.xlu0 %193
  %vm195 = vcmask 760832
  %v196 = vsel %vm195, %v186, %v188
  %v197 = vsel %vm195, %v188, %v190
  %v198 = vsel %vm195, %v190, %v192
  %v199 = vsel %vm195, %v192, %v194
  %205 = vst [vmem:[#allocation2 + $0x118] sm:$0xff] %v196
  %206 = vst [vmem:[#allocation2 + $0x120] sm:$0xff] %v197
  %207 = vst [vmem:[#allocation2 + $0x128] sm:$0xff] %v198
  %208 = vst [vmem:[#allocation2 + $0x130] sm:$0xff] %v199
  %209 = vst.msk [vmem:[#allocation2 + $0x138] sm:$0xff] %vm28, %v194
  %210 = vrot.lane.b32.xlu0 %v19, 92
  %v211 = vpop.permute.xlu0 %210
  %212 = vrot.lane.b32.xlu0 %v20, 92
  %v213 = vpop.permute.xlu0 %212
  %214 = vrot.lane.b32.xlu0 %v21, 92
  %v215 = vpop.permute.xlu0 %214
  %216 = vrot.lane.b32.xlu0 %v22, 92
  %v217 = vpop.permute.xlu0 %216
  %218 = vrot.lane.b32.xlu0 %v23, 92
  %v219 = vpop.permute.xlu0 %218
  %vm220 = vcmask 752640
  %v221 = vsel %vm220, %v211, %v213
  %v222 = vsel %vm220, %v213, %v215
  %v223 = vsel %vm220, %v215, %v217
  %v224 = vsel %vm220, %v217, %v219
  %230 = vst [vmem:[#allocation2 + $0x140] sm:$0xff] %v221
  %231 = vst [vmem:[#allocation2 + $0x148] sm:$0xff] %v222
  %232 = vst [vmem:[#allocation2 + $0x150] sm:$0xff] %v223
  %233 = vst [vmem:[#allocation2 + $0x158] sm:$0xff] %v224
  %234 = vst.msk [vmem:[#allocation2 + $0x160] sm:$0xff] %vm28, %v219
  %v235 = vld [vmem:[%s1] sm:$0xff]
  %v236 = vld [vmem:[#allocation2] sm:$0xff]
  %v237 = vld [vmem:[#allocation2 + $0x8] sm:$0xff]
  %v238 = vld [vmem:[#allocation2 + $0x10] sm:$0xff]
  %v239 = vld [vmem:[#allocation2 + $0x18] sm:$0xff]
  %v240 = vld [vmem:[#allocation2 + $0x20] sm:$0xff]
  %v241 = vld [vmem:[#allocation2 + $0x28] sm:$0xff]
  %v242 = vld [vmem:[#allocation2 + $0x30] sm:$0xff]
  %v243 = vld [vmem:[#allocation2 + $0x38] sm:$0xff]
  %v244 = vld [vmem:[#allocation2 + $0x40] sm:$0xff]
  %v245 = vld [vmem:[#allocation2 + $0x48] sm:$0xff]
  %v246 = vld [vmem:[#allocation2 + $0x50] sm:$0xff]
  %v247 = vld [vmem:[#allocation2 + $0x58] sm:$0xff]
  %v248 = vld [vmem:[#allocation2 + $0x60] sm:$0xff]
  %v249 = vld [vmem:[#allocation2 + $0x68] sm:$0xff]
  %v250 = vld [vmem:[#allocation2 + $0x70] sm:$0xff]
  %v251 = vld [vmem:[#allocation2 + $0x78] sm:$0xff]
  %v252 = vld [vmem:[#allocation2 + $0x80] sm:$0xff]
  %v253 = vld [vmem:[#allocation2 + $0x88] sm:$0xff]
  %v254 = vld [vmem:[#allocation2 + $0x90] sm:$0xff]
  %v255 = vld [vmem:[#allocation2 + $0x98] sm:$0xff]
  %v256 = vld [vmem:[#allocation2 + $0xa0] sm:$0xff]
  %v257 = vld [vmem:[#allocation2 + $0xa8] sm:$0xff]
  %v258 = vld [vmem:[#allocation2 + $0xb0] sm:$0xff]
  %v259 = vld [vmem:[#allocation2 + $0xb8] sm:$0xff]
  %v260 = vld [vmem:[#allocation2 + $0xc0] sm:$0xff]
  %v261 = vld [vmem:[#allocation2 + $0xc8] sm:$0xff]
  %v262 = vld [vmem:[#allocation2 + $0xd0] sm:$0xff]
  %v263 = vld [vmem:[#allocation2 + $0xd8] sm:$0xff]
  %v264 = vld [vmem:[#allocation2 + $0xe0] sm:$0xff]
  %v265 = vld [vmem:[#allocation2 + $0xe8] sm:$0xff]
  %v266 = vld [vmem:[#allocation2 + $0xf0] sm:$0xff]
  %v267 = vld [vmem:[#allocation2 + $0xf8] sm:$0xff]
  %v268 = vld [vmem:[#allocation2 + $0x100] sm:$0xff]
  %v269 = vld [vmem:[#allocation2 + $0x108] sm:$0xff]
  %v270 = vld [vmem:[#allocation2 + $0x110] sm:$0xff]
  %v271 = vld [vmem:[#allocation2 + $0x118] sm:$0xff]
  %v272 = vld [vmem:[#allocation2 + $0x120] sm:$0xff]
  %v273 = vld [vmem:[#allocation2 + $0x128] sm:$0xff]
  %v274 = vld [vmem:[#allocation2 + $0x130] sm:$0xff]
  %v275 = vld [vmem:[#allocation2 + $0x138] sm:$0xff]
  %v276 = vld [vmem:[#allocation2 + $0x140] sm:$0xff]
  %v277 = vld [vmem:[#allocation2 + $0x148] sm:$0xff]
  %v278 = vld [vmem:[#allocation2 + $0x150] sm:$0xff]
  %v279 = vld [vmem:[#allocation2 + $0x158] sm:$0xff]
  %v280 = vld [vmem:[#allocation2 + $0x160] sm:$0xff]
  %v281 = vld [vmem:[%s2] sm:$0xff]
  %v282 = vld [vmem:[%s2 + $0x8] sm:$0xff]
  %v283 = vld [vmem:[%s2 + $0x10] sm:$0xff]
  %v284 = vld [vmem:[%s2 + $0x18] sm:$0xff]
  %v285 = vld [vmem:[%s2 + $0x20] sm:$0xff]
  %vm286 = vcmask 588800
  %v288 = vsel %vm286, %v235, 0
  %290 = vmatprep.subr.mxu0 0.0
  %291 = vmatpush1.msra.mxu0 0.0
  %292 = vmatprep.subr.mxu0 0.0
  %293 = vmatpush1.msra.mxu0 0.0
  %294 = vmatprep.subr.mxu0 0.0
  %295 = vmatpush1.msra.mxu0 0.0
  %296 = vmatprep.subr.mxu0 0.0
  %297 = vmatpush1.msra.mxu0 0.0
  %298 = vmatprep.subr.mxu0 0.0
  %299 = vmatpush1.msra.mxu0 0.0
  %300 = vmatprep.subr.mxu0 0.0
  %301 = vmatpush1.msra.mxu0 0.0
  %302 = vmatprep.subr.mxu0 0.0
  %303 = vmatpush1.msra.mxu0 0.0
  %304 = vmatprep.subr.mxu0 %v277
  %305 = vmatpush1.msra.mxu0 %v276
  %306 = vmatprep.subr.mxu0 %v272
  %307 = vmatpush1.msra.mxu0 %v271
  %308 = vmatprep.subr.mxu0 %v267
  %309 = vmatpush1.msra.mxu0 %v266
  %310 = vmatprep.subr.mxu0 %v262
  %311 = vmatpush1.msra.mxu0 %v261
  %312 = vmatprep.subr.mxu0 %v257
  %313 = vmatpush1.msra.mxu0 %v256
  %314 = vmatprep.subr.mxu0 %v252
  %315 = vmatpush1.msra.mxu0 %v251
  %316 = vmatprep.subr.mxu0 %v247
  %317 = vmatpush1.msra.mxu0 %v246
  %318 = vmatprep.subr.mxu0 %v242
  %319 = vmatpush1.msra.mxu0 %v241
  %320 = vmatprep.subr.mxu0 %v237
  %321 = vmatpush1.msra.mxu0 %v236
  %322 = vmatprep.subr.mxu0 0.0
  %323 = vmatpush2.msra.mxu0 0.0
  %324 = vmatprep.subr.mxu0 0.0
  %325 = vmatpush2.msra.mxu0 0.0
  %326 = vmatprep.subr.mxu0 0.0
  %327 = vmatpush2.msra.mxu0 0.0
  %328 = vmatprep.subr.mxu0 0.0
  %329 = vmatpush2.msra.mxu0 0.0
  %330 = vmatprep.subr.mxu0 0.0
  %331 = vmatpush2.msra.mxu0 0.0
  %332 = vmatprep.subr.mxu0 0.0
  %333 = vmatpush2.msra.mxu0 0.0
  %334 = vmatprep.subr.mxu0 0.0
  %335 = vmatpush2.msra.mxu0 0.0
  %336 = vmatprep.subr.mxu0 0.0
  %337 = vmatpush2.msra.mxu0 0.0
  %338 = vmatprep.subr.mxu0 0.0
  %339 = vmatpush2.msra.mxu0 0.0
  %340 = vmatprep.subr.mxu0 0.0
  %341 = vmatpush2.msra.mxu0 0.0
  %342 = vmatprep.subr.mxu0 0.0
  %343 = vmatpush2.msra.mxu0 0.0
  %344 = vmatprep.subr.mxu0 0.0
  %345 = vmatpush2.msra.mxu0 0.0
  %346 = vmatprep.subr.mxu0 0.0
  %347 = vmatpush2.msra.mxu0 0.0
  %348 = vmatprep.subr.mxu0 0.0
  %349 = vmatpush2.msra.mxu0 0.0
  %350 = vmatprep.subr.mxu0 0.0
  %351 = vmatpush2.msra.mxu0 0.0
  %352 = vmatprep.subr.mxu0 0.0
  %353 = vmatpush2.msra.mxu0 0.0
  %354 = vmatprep.mubr.f32.mxu0 0.0
  %355 = vmatmul.mubr.f32.gmra.mxu0 %v288
  %v356 = vpop.f32.mrf.mxu0
  %v357 = vadd.f32 %v281, %v356
  %v358 = vpop.f32.mrf.mxu0
  %v359 = vadd.f32 %v282, %v358
  %360 = vdwg.mxu0
  %361 = vmatprep.subr.mxu0 0.0
  %362 = vmatpush1.msra.mxu0 0.0
  %363 = vmatprep.subr.mxu0 0.0
  %364 = vmatpush1.msra.mxu0 0.0
  %365 = vmatprep.subr.mxu0 0.0
  %366 = vmatpush1.msra.mxu0 0.0
  %367 = vmatprep.subr.mxu0 0.0
  %368 = vmatpush1.msra.mxu0 0.0
  %369 = vmatprep.subr.mxu0 0.0
  %370 = vmatpush1.msra.mxu0 0.0
  %371 = vmatprep.subr.mxu0 0.0
  %372 = vmatpush1.msra.mxu0 0.0
  %373 = vmatprep.subr.mxu0 0.0
  %374 = vmatpush1.msra.mxu0 0.0
  %375 = vmatprep.subr.mxu0 %v279
  %376 = vmatpush1.msra.mxu0 %v278
  %377 = vmatprep.subr.mxu0 %v274
  %378 = vmatpush1.msra.mxu0 %v273
  %379 = vmatprep.subr.mxu0 %v269
  %380 = vmatpush1.msra.mxu0 %v268
  %381 = vmatprep.subr.mxu0 %v264
  %382 = vmatpush1.msra.mxu0 %v263
  %383 = vmatprep.subr.mxu0 %v259
  %384 = vmatpush1.msra.mxu0 %v258
  %385 = vmatprep.subr.mxu0 %v254
  %386 = vmatpush1.msra.mxu0 %v253
  %387 = vmatprep.subr.mxu0 %v249
  %388 = vmatpush1.msra.mxu0 %v248
  %389 = vmatprep.subr.mxu0 %v244
  %390 = vmatpush1.msra.mxu0 %v243
  %391 = vmatprep.subr.mxu0 %v239
  %392 = vmatpush1.msra.mxu0 %v238
  %393 = vmatprep.subr.mxu0 0.0
  %394 = vmatpush2.msra.mxu0 0.0
  %395 = vmatprep.subr.mxu0 0.0
  %396 = vmatpush2.msra.mxu0 0.0
  %397 = vmatprep.subr.mxu0 0.0
  %398 = vmatpush2.msra.mxu0 0.0
  %399 = vmatprep.subr.mxu0 0.0
  %400 = vmatpush2.msra.mxu0 0.0
  %401 = vmatprep.subr.mxu0 0.0
  %402 = vmatpush2.msra.mxu0 0.0
  %403 = vmatprep.subr.mxu0 0.0
  %404 = vmatpush2.msra.mxu0 0.0
  %405 = vmatprep.subr.mxu0 0.0
  %406 = vmatpush2.msra.mxu0 0.0
  %407 = vmatprep.subr.mxu0 0.0
  %408 = vmatpush2.msra.mxu0 0.0
  %409 = vmatprep.subr.mxu0 0.0
  %410 = vmatpush2.msra.mxu0 0.0
  %411 = vmatprep.subr.mxu0 0.0
  %412 = vmatpush2.msra.mxu0 0.0
  %413 = vmatprep.subr.mxu0 0.0
  %414 = vmatpush2.msra.mxu0 0.0
  %415 = vmatprep.subr.mxu0 0.0
  %416 = vmatpush2.msra.mxu0 0.0
  %417 = vmatprep.subr.mxu0 0.0
  %418 = vmatpush2.msra.mxu0 0.0
  %419 = vmatprep.subr.mxu0 0.0
  %420 = vmatpush2.msra.mxu0 0.0
  %421 = vmatprep.subr.mxu0 0.0
  %422 = vmatpush2.msra.mxu0 0.0
  %423 = vmatprep.subr.mxu0 0.0
  %424 = vmatpush2.msra.mxu0 0.0
  %425 = vmatprep.mubr.f32.mxu0 0.0
  %426 = vmatmul.mubr.f32.gmra.mxu0 %v288
  %v427 = vpop.f32.mrf.mxu0
  %v428 = vadd.f32 %v283, %v427
  %v429 = vpop.f32.mrf.mxu0
  %v430 = vadd.f32 %v284, %v429
  %431 = vdwg.mxu0
  %432 = vmatprep.subr.mxu0 0.0
  %433 = vmatpush1.msra.mxu0 0.0
  %434 = vmatprep.subr.mxu0 0.0
  %435 = vmatpush1.msra.mxu0 0.0
  %436 = vmatprep.subr.mxu0 0.0
  %437 = vmatpush1.msra.mxu0 0.0
  %438 = vmatprep.subr.mxu0 0.0
  %439 = vmatpush1.msra.mxu0 0.0
  %440 = vmatprep.subr.mxu0 0.0
  %441 = vmatpush1.msra.mxu0 0.0
  %442 = vmatprep.subr.mxu0 0.0
  %443 = vmatpush1.msra.mxu0 0.0
  %444 = vmatprep.subr.mxu0 0.0
  %445 = vmatpush1.msra.mxu0 0.0
  %446 = vmatprep.subr.mxu0 0.0
  %447 = vmatpush1.msra.mxu0 %v280
  %448 = vmatprep.subr.mxu0 0.0
  %449 = vmatpush1.msra.mxu0 %v275
  %450 = vmatprep.subr.mxu0 0.0
  %451 = vmatpush1.msra.mxu0 %v270
  %452 = vmatprep.subr.mxu0 0.0
  %453 = vmatpush1.msra.mxu0 %v265
  %454 = vmatprep.subr.mxu0 0.0
  %455 = vmatpush1.msra.mxu0 %v260
  %456 = vmatprep.subr.mxu0 0.0
  %457 = vmatpush1.msra.mxu0 %v255
  %458 = vmatprep.subr.mxu0 0.0
  %459 = vmatpush1.msra.mxu0 %v250
  %460 = vmatprep.subr.mxu0 0.0
  %461 = vmatpush1.msra.mxu0 %v245
  %462 = vmatprep.subr.mxu0 0.0
  %463 = vmatpush1.msra.mxu0 %v240
  %464 = vmatprep.subr.mxu0 0.0
  %465 = vmatpush2.msra.mxu0 0.0
  %466 = vmatprep.subr.mxu0 0.0
  %467 = vmatpush2.msra.mxu0 0.0
  %468 = vmatprep.subr.mxu0 0.0
  %469 = vmatpush2.msra.mxu0 0.0
  %470 = vmatprep.subr.mxu0 0.0
  %471 = vmatpush2.msra.mxu0 0.0
  %472 = vmatprep.subr.mxu0 0.0
  %473 = vmatpush2.msra.mxu0 0.0
  %474 = vmatprep.subr.mxu0 0.0
  %475 = vmatpush2.msra.mxu0 0.0
  %476 = vmatprep.subr.mxu0 0.0
  %477 = vmatpush2.msra.mxu0 0.0
  %478 = vmatprep.subr.mxu0 0.0
  %479 = vmatpush2.msra.mxu0 0.0
  %480 = vmatprep.subr.mxu0 0.0
  %481 = vmatpush2.msra.mxu0 0.0
  %482 = vmatprep.subr.mxu0 0.0
  %483 = vmatpush2.msra.mxu0 0.0
  %484 = vmatprep.subr.mxu0 0.0
  %485 = vmatpush2.msra.mxu0 0.0
  %486 = vmatprep.subr.mxu0 0.0
  %487 = vmatpush2.msra.mxu0 0.0
  %488 = vmatprep.subr.mxu0 0.0
  %489 = vmatpush2.msra.mxu0 0.0
  %490 = vmatprep.subr.mxu0 0.0
  %491 = vmatpush2.msra.mxu0 0.0
  %492 = vmatprep.subr.mxu0 0.0
  %493 = vmatpush2.msra.mxu0 0.0
  %494 = vmatprep.subr.mxu0 0.0
  %495 = vmatpush2.msra.mxu0 0.0
  %496 = vmatprep.mubr.f32.mxu0 0.0
  %497 = vmatmul.mubr.f32.gmra.mxu0 %v288
  %v498 = vpop.f32.mrf.mxu0
  %v499 = vadd.f32 %v285, %v498
  %v500 = vpop.f32.mrf.mxu0
  %501 = vdwg.mxu0
  %502 = vst [vmem:[%s3] sm:$0xff] %v357
  %503 = vst [vmem:[%s3 + $0x8] sm:$0xff] %v359
  %504 = vst [vmem:[%s3 + $0x10] sm:$0xff] %v428
  %505 = vst [vmem:[%s3 + $0x18] sm:$0xff] %v430
  %506 = vst.msk [vmem:[%s3 + $0x20] sm:$0xff] %vm28, %v499
  // Predicated region
  $region14: #{_lambda_.5} parent=0 // pred_check
    _
  $region15: #{_lambda_.5} parent=0 // pred_check_branch
    %508 = sbr.rel (0) target = $region17
  $region16: #{_lambda_.5} parent=0 // pred_region
    _
  $region17: #{_lambda_.5} parent=0 // pred_fallthru
    _
  // Predicated region
  $region18: #{_lambda_.5} parent=0 // pred_check
    _
  $region19: #{_lambda_.5} parent=0 // pred_check_branch
    %510 = sbr.rel (0) target = $region21
  $region20: #{_lambda_.5} parent=0 // pred_region
    _
  $region21: #{_lambda_.5} parent=0 // pred_fallthru
    _

</llo_original>
